<compile_context>
chip_gen: v7x
topology: tpu7x:2x2x1
jax: 0.10.0
libtpu: 0.0.40
codegen_flags: <defaults>
</compile_context>

<pallas_src>
import numpy as np
import jax
import jax.numpy as jnp
from jax.experimental import pallas as pl
from jax.experimental.pallas import tpu as pltpu


# ----------------------------------------------------------------------------
# Host-side (free, one-time) parameter re-layout
# ----------------------------------------------------------------------------

def _prepare_params(w_conv, b_conv, w_fc, b_fc, input_hw):
    """Re-layout PyTorch parameters (OIHW conv, (out,in) fc) for the fused kernel."""
    H, W = input_hw
    w_conv = np.asarray(w_conv, np.float32)          # (Cout, Cin, KH, KW)
    b_conv = np.asarray(b_conv, np.float32)          # (Cout,)
    w_fc = np.asarray(w_fc, np.float32)              # (hidden, Cout*Ho*Wo), NCHW-flat
    b_fc = np.asarray(b_fc, np.float32)              # (hidden,)

    Cout, Cin, KH, KW = w_conv.shape
    hidden = w_fc.shape[0]
    pad = KW // 2
    Wp = W + 2 * pad
    Ho, Wo = H // 2, W // 2
    lanes = W * Cout                                  # conv-output lane width (w, c)
    grp = 2 * Cout                                    # one 2x2-pool lane group

    # (1) banded block-Toeplitz conv weights: one (Wp*Cin, W*Cout) matrix per kh
    #     so   conv[(n,h), (w,co)] = sum_kh  slab_kh[(n,h), :] @ w_toep[kh]
    w_toep = np.zeros((KH, Wp * Cin, lanes), np.float32)
    for kh in range(KH):
        for kw in range(KW):
            blk = w_conv[:, :, kh, kw].T              # (Cin, Cout)
            for ow in range(W):
                iw = ow + kw                          # padded input column
                w_toep[kh, iw * Cin:(iw + 1) * Cin,
                       ow * Cout:(ow + 1) * Cout] = blk

    # (2) conv bias broadcast over the (w, c) lane layout
    b_conv_row = np.tile(b_conv, W).reshape(1, lanes)

    # (3) lane permutation swapping the even-w / odd-w halves of each 2*Cout
    #     lane group (w-direction pool max is done on the MXU with this)
    perm = np.zeros((lanes, lanes), np.float32)
    for l in range(lanes):
        q, r = divmod(l, grp)
        perm[l, q * grp + (r + Cout) % grp] = 1.0

    # (4) fc weight permuted to the pooled lane layout (lane = 2*wo*Cout + c for
    #     row block ho); odd-w duplicate lanes get zero rows so no lane
    #     compaction is needed in the kernel.  Matches torch's NCHW x.view().
    w_fc_blk = np.zeros((Ho, lanes, hidden), np.float32)
    for ho in range(Ho):
        for wo in range(Wo):
            for c in range(Cout):
                w_fc_blk[ho, wo * grp + c, :] = w_fc[:, c * Ho * Wo + ho * Wo + wo]

    b_fc_row = b_fc.reshape(1, hidden)

    return (jnp.asarray(w_toep), jnp.asarray(b_conv_row), jnp.asarray(perm),
            jnp.asarray(w_fc_blk), jnp.asarray(b_fc_row))


# ----------------------------------------------------------------------------
# Fused Pallas kernel: conv1 -> relu1 -> pool1 -> fc  (conv1 kept pre-ReLU)
# ----------------------------------------------------------------------------

def _fused_forward(x_slab, w_toep, b_conv_row, perm, w_fc_blk, b_fc_row):
    """x_slab: (N, Hp, Wp*Cin) padded NHWC input with (w, ci) folded into lanes.

    Returns: (pre-ReLU conv1 as a lane-dense (N*H, W*Cout) slab, fc as (N, hidden)).
    """
    N, Hp, WPC = x_slab.shape
    KH, _, lanes = w_toep.shape
    H = Hp - KH + 1
    Ho = H // 2
    hidden = w_fc_blk.shape[-1]

    def kernel(x_ref, wt_ref, bc_ref, p_ref, wf_ref, bf_ref,
               conv_ref, fc_ref, pool_ref):
        # ---- conv1: KH banded-Toeplitz MXU matmuls over padded row slabs ----
        acc = jnp.dot(x_ref[:, 0:H, :].reshape(N * H, WPC), wt_ref[0],
                      preferred_element_type=jnp.float32)
        for kh in range(1, KH):
            acc = acc + jnp.dot(x_ref[:, kh:kh + H, :].reshape(N * H, WPC),
                                wt_ref[kh], preferred_element_type=jnp.float32)
        conv = acc + bc_ref[...]
        conv_ref[...] = conv          # pre-ReLU 'conv1' feature, lane-dense store

        # ---- relu1 + pool1 (2x2 max); data never leaves VMEM ----
        even = conv_ref[pl.ds(0, N * Ho, stride=2), :]    # rows h = 0, 2, 4, ...
        odd = conv_ref[pl.ds(1, N * Ho, stride=2), :]     # rows h = 1, 3, 5, ...
        hmax = jnp.maximum(jnp.maximum(even, odd), 0.0)   # (N*Ho, lanes)
        swapped = jnp.dot(hmax, p_ref[...], preferred_element_type=jnp.float32)
        pool_ref[...] = jnp.maximum(hmax, swapped)        # lane 2*wo*Cout+c = max

        # ---- fc: Ho accumulated K=lanes MXU passes; ho folded into the weight ----
        out = jnp.dot(pool_ref[pl.ds(0, N, stride=Ho), :], wf_ref[0],
                      preferred_element_type=jnp.float32)
        for ho in range(1, Ho):
            out = out + jnp.dot(pool_ref[pl.ds(ho, N, stride=Ho), :], wf_ref[ho],
                                preferred_element_type=jnp.float32)
        fc_ref[...] = out + bf_ref[...]

    flops = (2 * KH * (N * H) * WPC * lanes           # conv
             + 2 * (N * Ho) * lanes * lanes           # pool lane-swap matmul
             + 2 * Ho * N * lanes * hidden)           # fc
    bytes_accessed = 4 * (x_slab.size + w_toep.size + b_conv_row.size + perm.size
                          + w_fc_blk.size + b_fc_row.size
                          + N * H * lanes + N * hidden)

    return pl.pallas_call(
        kernel,
        out_shape=(jax.ShapeDtypeStruct((N * H, lanes), jnp.float32),
                   jax.ShapeDtypeStruct((N, hidden), jnp.float32)),
        scratch_shapes=[pltpu.VMEM((N * Ho, lanes), jnp.float32)],
        cost_estimate=pl.CostEstimate(flops=flops, transcendentals=0,
                                      bytes_accessed=bytes_accessed),
    )(x_slab, w_toep, b_conv_row, perm, w_fc_blk, b_fc_row)


# ----------------------------------------------------------------------------
# FeatureExtractor (exact forward-pass semantics of the PyTorch module)
# ----------------------------------------------------------------------------

class FeatureExtractorPallas:
    """Forward-equivalent of FeatureExtractor(submodule, ['conv1', 'fc']) for the
    conv1->relu1->pool1->fc submodule, with the whole forward fused into one
    Pallas kernel.  'conv1' is extracted pre-ReLU, 'fc' after the flattened
    (NCHW-order) linear layer, exactly as in the PyTorch forward."""

    def __init__(self, w_conv, b_conv, w_fc, b_fc, input_hw,
                 extracted_layers=('conv1', 'fc')):
        self.extracted_layers = list(extracted_layers)
        self.params = _prepare_params(w_conv, b_conv, w_fc, b_fc, input_hw)
        self._cout = int(w_conv.shape[0])
        self._pad = int(w_conv.shape[-1]) // 2
        self._fwd = jax.jit(self._forward)

    def _forward(self, x_nchw, params):
        w_toep, b_conv_row, perm, w_fc_blk, b_fc_row = params
        N, Cin, H, W = x_nchw.shape
        p = self._pad
        # NCHW -> padded NHWC with (w, ci) folded into the lane dim (tiny XLA glue)
        xh = jnp.transpose(x_nchw, (0, 2, 3, 1))
        xp = jnp.pad(xh, ((0, 0), (p, p), (p, p), (0, 0)))
        x_slab = xp.reshape(N, H + 2 * p, (W + 2 * p) * Cin)

        conv_flat, fc_out = _fused_forward(x_slab, w_toep, b_conv_row, perm,
                                           w_fc_blk, b_fc_row)
        # lane-dense (N*H, W*Cout) -> NCHW, matching the PyTorch module output
        conv1 = jnp.transpose(conv_flat.reshape(N, H, W, self._cout), (0, 3, 1, 2))
        feats = {'conv1': conv1, 'fc': fc_out}
        return [feats[name] for name in self.extracted_layers]

    def __call__(self, x):
        return self._fwd(x, self.params)


# ----------------------------------------------------------------------------
# Main
# ----------------------------------------------------------------------------

if __name__ == "__main__":
    key = jax.random.PRNGKey(0)
    kx, kw1, kb1, kw2, kb2 = jax.random.split(key, 5)

    # small shapes consistent with a conv->relu->pool->fc submodule
    N, Cin, H, W = 2, 4, 16, 16
    Cout, KH, KW = 8, 3, 3
    hidden = 32
    Ho, Wo = H // 2, W // 2
    Ffeat = Cout * Ho * Wo                           # 8 * 8 * 8 = 512

    x = jax.random.normal(kx, (N, Cin, H, W), jnp.float32)

    # deterministic synthetic parameters (PyTorch layouts: OIHW, (out, in))
    w_conv = jax.random.normal(kw1, (Cout, Cin, KH, KW), jnp.float32) * 0.1
    b_conv = jax.random.normal(kb1, (Cout,), jnp.float32) * 0.1
    w_fc = jax.random.normal(kw2, (hidden, Ffeat), jnp.float32) * 0.05
    b_fc = jax.random.normal(kb2, (hidden,), jnp.float32) * 0.05

    extractor = FeatureExtractorPallas(w_conv, b_conv, w_fc, b_fc, (H, W),
                                       extracted_layers=['conv1', 'fc'])
    outputs = extractor(x)
    outputs = jax.block_until_ready(outputs)

    # -------- pure-JAX reference (matches PyTorch semantics) ------------------
    conv_ref = jax.lax.conv_general_dilated(
        x, w_conv, window_strides=(1, 1), padding='SAME',
        dimension_numbers=('NCHW', 'OIHW', 'NCHW')) + b_conv[None, :, None, None]
    relu_ref = jnp.maximum(conv_ref, 0.0)
    pool_ref = relu_ref.reshape(N, Cout, Ho, 2, Wo, 2).max(axis=(3, 5))
    fc_ref = pool_ref.reshape(N, -1) @ w_fc.T + b_fc

    assert len(outputs) == 2
    assert outputs[0].shape == (N, Cout, H, W)
    assert outputs[1].shape == (N, hidden)
    assert jnp.allclose(outputs[0], conv_ref, rtol=1e-4, atol=1e-4)
    assert jnp.allclose(outputs[1], fc_ref, rtol=1e-4, atol=1e-4)

    print("KERNEL_OK")
</pallas_src>

<mosaic_0001>
module attributes {stable_mosaic.version = 11 : i64} {
  func.func @kernel(%arg0: memref<2x18x72xf32, #tpu.memory_space<vmem>>, %arg1: memref<3x72x128xf32, #tpu.memory_space<vmem>>, %arg2: memref<1x128xf32, #tpu.memory_space<vmem>>, %arg3: memref<128x128xf32, #tpu.memory_space<vmem>>, %arg4: memref<8x128x32xf32, #tpu.memory_space<vmem>>, %arg5: memref<1x32xf32, #tpu.memory_space<vmem>>, %arg6: memref<32x128xf32, #tpu.memory_space<vmem>>, %arg7: memref<2x32xf32, #tpu.memory_space<vmem>>, %arg8: memref<16x128xf32, #tpu.memory_space<vmem>>) attributes {dimension_semantics = [], scalar_prefetch = 0 : i64, scratch_operands = 1 : i64, tpu.core_type = #tpu.core_type<tc>} {
    %c0 = arith.constant 0 : index
    %c0_0 = arith.constant 0 : index
    %c0_1 = arith.constant 0 : index
    %0 = vector.load %arg0[%c0, %c0_0, %c0_1] : memref<2x18x72xf32, #tpu.memory_space<vmem>>, vector<2x16x72xf32>
    %1 = vector.shape_cast %0 : vector<2x16x72xf32> to vector<32x72xf32>
    %c0_2 = arith.constant 0 : index
    %c0_3 = arith.constant 0 : index
    %c0_4 = arith.constant 0 : index
    %2 = vector.load %arg1[%c0_2, %c0_3, %c0_4] : memref<3x72x128xf32, #tpu.memory_space<vmem>>, vector<1x72x128xf32>
    %3 = vector.shape_cast %2 : vector<1x72x128xf32> to vector<72x128xf32>
    %cst = arith.constant dense<0.000000e+00> : vector<32x128xf32>
    %4 = tpu.matmul %1, %3, %cst {dimension_numbers = #tpu.dot_dimension_numbers<[1], [0], [0], [1], [0, 0, 1, 1], [], []>} : vector<32x72xf32>, vector<72x128xf32>, vector<32x128xf32> -> vector<32x128xf32>
    %c0_5 = arith.constant 0 : index
    %c1 = arith.constant 1 : index
    %c0_6 = arith.constant 0 : index
    %5 = vector.load %arg0[%c0_5, %c1, %c0_6] : memref<2x18x72xf32, #tpu.memory_space<vmem>>, vector<2x16x72xf32>
    %6 = vector.shape_cast %5 : vector<2x16x72xf32> to vector<32x72xf32>
    %c1_7 = arith.constant 1 : index
    %c0_8 = arith.constant 0 : index
    %c0_9 = arith.constant 0 : index
    %7 = vector.load %arg1[%c1_7, %c0_8, %c0_9] : memref<3x72x128xf32, #tpu.memory_space<vmem>>, vector<1x72x128xf32>
    %8 = vector.shape_cast %7 : vector<1x72x128xf32> to vector<72x128xf32>
    %cst_10 = arith.constant dense<0.000000e+00> : vector<32x128xf32>
    %9 = tpu.matmul %6, %8, %cst_10 {dimension_numbers = #tpu.dot_dimension_numbers<[1], [0], [0], [1], [0, 0, 1, 1], [], []>} : vector<32x72xf32>, vector<72x128xf32>, vector<32x128xf32> -> vector<32x128xf32>
    %10 = arith.addf %4, %9 : vector<32x128xf32>
    %c0_11 = arith.constant 0 : index
    %c2 = arith.constant 2 : index
    %c0_12 = arith.constant 0 : index
    %11 = vector.load %arg0[%c0_11, %c2, %c0_12] : memref<2x18x72xf32, #tpu.memory_space<vmem>>, vector<2x16x72xf32>
    %12 = vector.shape_cast %11 : vector<2x16x72xf32> to vector<32x72xf32>
    %c2_13 = arith.constant 2 : index
    %c0_14 = arith.constant 0 : index
    %c0_15 = arith.constant 0 : index
    %13 = vector.load %arg1[%c2_13, %c0_14, %c0_15] : memref<3x72x128xf32, #tpu.memory_space<vmem>>, vector<1x72x128xf32>
    %14 = vector.shape_cast %13 : vector<1x72x128xf32> to vector<72x128xf32>
    %cst_16 = arith.constant dense<0.000000e+00> : vector<32x128xf32>
    %15 = tpu.matmul %12, %14, %cst_16 {dimension_numbers = #tpu.dot_dimension_numbers<[1], [0], [0], [1], [0, 0, 1, 1], [], []>} : vector<32x72xf32>, vector<72x128xf32>, vector<32x128xf32> -> vector<32x128xf32>
    %16 = arith.addf %10, %15 : vector<32x128xf32>
    %c0_17 = arith.constant 0 : index
    %c0_18 = arith.constant 0 : index
    %17 = vector.load %arg2[%c0_17, %c0_18] : memref<1x128xf32, #tpu.memory_space<vmem>>, vector<1x128xf32>
    %18 = vector.broadcast %17 : vector<1x128xf32> to vector<32x128xf32>
    %19 = arith.addf %16, %18 : vector<32x128xf32>
    %c0_19 = arith.constant 0 : index
    %c0_20 = arith.constant 0 : index
    %20 = vector.load %arg6[%c0_19, %c0_20] : memref<32x128xf32, #tpu.memory_space<vmem>>, vector<32x128xf32>
    tpu.vector_store %arg6[%c0_19, %c0_20], %19 {strides = array<i32>} : memref<32x128xf32, #tpu.memory_space<vmem>>, vector<32x128xf32>,
    %c0_21 = arith.constant 0 : index
    %c0_22 = arith.constant 0 : index
    %21 = tpu.strided_load %arg6[%c0_21, %c0_22] {strides = array<i32: 2, 1>} : memref<32x128xf32, #tpu.memory_space<vmem>>, vector<16x128xf32>
    %c1_23 = arith.constant 1 : index
    %c0_24 = arith.constant 0 : index
    %22 = tpu.strided_load %arg6[%c1_23, %c0_24] {strides = array<i32: 2, 1>} : memref<32x128xf32, #tpu.memory_space<vmem>>, vector<16x128xf32>
    %23 = arith.maximumf %21, %22 : vector<16x128xf32>
    %cst_25 = arith.constant 0.000000e+00 : f32
    %24 = vector.broadcast %cst_25 : f32 to vector<16x128xf32>
    %25 = arith.maximumf %23, %24 : vector<16x128xf32>
    %c0_26 = arith.constant 0 : index
    %c0_27 = arith.constant 0 : index
    %26 = vector.load %arg3[%c0_26, %c0_27] : memref<128x128xf32, #tpu.memory_space<vmem>>, vector<128x128xf32>
    %cst_28 = arith.constant dense<0.000000e+00> : vector<16x128xf32>
    %27 = tpu.matmul %25, %26, %cst_28 {dimension_numbers = #tpu.dot_dimension_numbers<[1], [0], [0], [1], [0, 0, 1, 1], [], []>} : vector<16x128xf32>, vector<128x128xf32>, vector<16x128xf32> -> vector<16x128xf32>
    %28 = arith.maximumf %25, %27 : vector<16x128xf32>
    %c0_29 = arith.constant 0 : index
    %c0_30 = arith.constant 0 : index
    %29 = vector.load %arg8[%c0_29, %c0_30] : memref<16x128xf32, #tpu.memory_space<vmem>>, vector<16x128xf32>
    tpu.vector_store %arg8[%c0_29, %c0_30], %28 {strides = array<i32>} : memref<16x128xf32, #tpu.memory_space<vmem>>, vector<16x128xf32>,
    %c0_31 = arith.constant 0 : index
    %c0_32 = arith.constant 0 : index
    %30 = tpu.strided_load %arg8[%c0_31, %c0_32] {strides = array<i32: 8, 1>} : memref<16x128xf32, #tpu.memory_space<vmem>>, vector<2x128xf32>
    %c0_33 = arith.constant 0 : index
    %c0_34 = arith.constant 0 : index
    %c0_35 = arith.constant 0 : index
    %31 = vector.load %arg4[%c0_33, %c0_34, %c0_35] : memref<8x128x32xf32, #tpu.memory_space<vmem>>, vector<1x128x32xf32>
    %32 = vector.shape_cast %31 : vector<1x128x32xf32> to vector<128x32xf32>
    %cst_36 = arith.constant dense<0.000000e+00> : vector<2x32xf32>
    %33 = tpu.matmul %30, %32, %cst_36 {dimension_numbers = #tpu.dot_dimension_numbers<[1], [0], [0], [1], [0, 0, 1, 1], [], []>} : vector<2x128xf32>, vector<128x32xf32>, vector<2x32xf32> -> vector<2x32xf32>
    %c1_37 = arith.constant 1 : index
    %c0_38 = arith.constant 0 : index
    %34 = tpu.strided_load %arg8[%c1_37, %c0_38] {strides = array<i32: 8, 1>} : memref<16x128xf32, #tpu.memory_space<vmem>>, vector<2x128xf32>
    %c1_39 = arith.constant 1 : index
    %c0_40 = arith.constant 0 : index
    %c0_41 = arith.constant 0 : index
    %35 = vector.load %arg4[%c1_39, %c0_40, %c0_41] : memref<8x128x32xf32, #tpu.memory_space<vmem>>, vector<1x128x32xf32>
    %36 = vector.shape_cast %35 : vector<1x128x32xf32> to vector<128x32xf32>
    %cst_42 = arith.constant dense<0.000000e+00> : vector<2x32xf32>
    %37 = tpu.matmul %34, %36, %cst_42 {dimension_numbers = #tpu.dot_dimension_numbers<[1], [0], [0], [1], [0, 0, 1, 1], [], []>} : vector<2x128xf32>, vector<128x32xf32>, vector<2x32xf32> -> vector<2x32xf32>
    %38 = arith.addf %33, %37 : vector<2x32xf32>
    %c2_43 = arith.constant 2 : index
    %c0_44 = arith.constant 0 : index
    %39 = tpu.strided_load %arg8[%c2_43, %c0_44] {strides = array<i32: 8, 1>} : memref<16x128xf32, #tpu.memory_space<vmem>>, vector<2x128xf32>
    %c2_45 = arith.constant 2 : index
    %c0_46 = arith.constant 0 : index
    %c0_47 = arith.constant 0 : index
    %40 = vector.load %arg4[%c2_45, %c0_46, %c0_47] : memref<8x128x32xf32, #tpu.memory_space<vmem>>, vector<1x128x32xf32>
    %41 = vector.shape_cast %40 : vector<1x128x32xf32> to vector<128x32xf32>
    %cst_48 = arith.constant dense<0.000000e+00> : vector<2x32xf32>
    %42 = tpu.matmul %39, %41, %cst_48 {dimension_numbers = #tpu.dot_dimension_numbers<[1], [0], [0], [1], [0, 0, 1, 1], [], []>} : vector<2x128xf32>, vector<128x32xf32>, vector<2x32xf32> -> vector<2x32xf32>
    %43 = arith.addf %38, %42 : vector<2x32xf32>
    %c3 = arith.constant 3 : index
    %c0_49 = arith.constant 0 : index
    %44 = tpu.strided_load %arg8[%c3, %c0_49] {strides = array<i32: 8, 1>} : memref<16x128xf32, #tpu.memory_space<vmem>>, vector<2x128xf32>
    %c3_50 = arith.constant 3 : index
    %c0_51 = arith.constant 0 : index
    %c0_52 = arith.constant 0 : index
    %45 = vector.load %arg4[%c3_50, %c0_51, %c0_52] : memref<8x128x32xf32, #tpu.memory_space<vmem>>, vector<1x128x32xf32>
    %46 = vector.shape_cast %45 : vector<1x128x32xf32> to vector<128x32xf32>
    %cst_53 = arith.constant dense<0.000000e+00> : vector<2x32xf32>
    %47 = tpu.matmul %44, %46, %cst_53 {dimension_numbers = #tpu.dot_dimension_numbers<[1], [0], [0], [1], [0, 0, 1, 1], [], []>} : vector<2x128xf32>, vector<128x32xf32>, vector<2x32xf32> -> vector<2x32xf32>
    %48 = arith.addf %43, %47 : vector<2x32xf32>
    %c4 = arith.constant 4 : index
    %c0_54 = arith.constant 0 : index
    %49 = tpu.strided_load %arg8[%c4, %c0_54] {strides = array<i32: 8, 1>} : memref<16x128xf32, #tpu.memory_space<vmem>>, vector<2x128xf32>
    %c4_55 = arith.constant 4 : index
    %c0_56 = arith.constant 0 : index
    %c0_57 = arith.constant 0 : index
    %50 = vector.load %arg4[%c4_55, %c0_56, %c0_57] : memref<8x128x32xf32, #tpu.memory_space<vmem>>, vector<1x128x32xf32>
    %51 = vector.shape_cast %50 : vector<1x128x32xf32> to vector<128x32xf32>
    %cst_58 = arith.constant dense<0.000000e+00> : vector<2x32xf32>
    %52 = tpu.matmul %49, %51, %cst_58 {dimension_numbers = #tpu.dot_dimension_numbers<[1], [0], [0], [1], [0, 0, 1, 1], [], []>} : vector<2x128xf32>, vector<128x32xf32>, vector<2x32xf32> -> vector<2x32xf32>
    %53 = arith.addf %48, %52 : vector<2x32xf32>
    %c5 = arith.constant 5 : index
    %c0_59 = arith.constant 0 : index
    %54 = tpu.strided_load %arg8[%c5, %c0_59] {strides = array<i32: 8, 1>} : memref<16x128xf32, #tpu.memory_space<vmem>>, vector<2x128xf32>
    %c5_60 = arith.constant 5 : index
    %c0_61 = arith.constant 0 : index
    %c0_62 = arith.constant 0 : index
    %55 = vector.load %arg4[%c5_60, %c0_61, %c0_62] : memref<8x128x32xf32, #tpu.memory_space<vmem>>, vector<1x128x32xf32>
    %56 = vector.shape_cast %55 : vector<1x128x32xf32> to vector<128x32xf32>
    %cst_63 = arith.constant dense<0.000000e+00> : vector<2x32xf32>
    %57 = tpu.matmul %54, %56, %cst_63 {dimension_numbers = #tpu.dot_dimension_numbers<[1], [0], [0], [1], [0, 0, 1, 1], [], []>} : vector<2x128xf32>, vector<128x32xf32>, vector<2x32xf32> -> vector<2x32xf32>
    %58 = arith.addf %53, %57 : vector<2x32xf32>
    %c6 = arith.constant 6 : index
    %c0_64 = arith.constant 0 : index
    %59 = tpu.strided_load %arg8[%c6, %c0_64] {strides = array<i32: 8, 1>} : memref<16x128xf32, #tpu.memory_space<vmem>>, vector<2x128xf32>
    %c6_65 = arith.constant 6 : index
    %c0_66 = arith.constant 0 : index
    %c0_67 = arith.constant 0 : index
    %60 = vector.load %arg4[%c6_65, %c0_66, %c0_67] : memref<8x128x32xf32, #tpu.memory_space<vmem>>, vector<1x128x32xf32>
    %61 = vector.shape_cast %60 : vector<1x128x32xf32> to vector<128x32xf32>
    %cst_68 = arith.constant dense<0.000000e+00> : vector<2x32xf32>
    %62 = tpu.matmul %59, %61, %cst_68 {dimension_numbers = #tpu.dot_dimension_numbers<[1], [0], [0], [1], [0, 0, 1, 1], [], []>} : vector<2x128xf32>, vector<128x32xf32>, vector<2x32xf32> -> vector<2x32xf32>
    %63 = arith.addf %58, %62 : vector<2x32xf32>
    %c7 = arith.constant 7 : index
    %c0_69 = arith.constant 0 : index
    %64 = tpu.strided_load %arg8[%c7, %c0_69] {strides = array<i32: 8, 1>} : memref<16x128xf32, #tpu.memory_space<vmem>>, vector<2x128xf32>
    %c7_70 = arith.constant 7 : index
    %c0_71 = arith.constant 0 : index
    %c0_72 = arith.constant 0 : index
    %65 = vector.load %arg4[%c7_70, %c0_71, %c0_72] : memref<8x128x32xf32, #tpu.memory_space<vmem>>, vector<1x128x32xf32>
    %66 = vector.shape_cast %65 : vector<1x128x32xf32> to vector<128x32xf32>
    %cst_73 = arith.constant dense<0.000000e+00> : vector<2x32xf32>
    %67 = tpu.matmul %64, %66, %cst_73 {dimension_numbers = #tpu.dot_dimension_numbers<[1], [0], [0], [1], [0, 0, 1, 1], [], []>} : vector<2x128xf32>, vector<128x32xf32>, vector<2x32xf32> -> vector<2x32xf32>
    %68 = arith.addf %63, %67 : vector<2x32xf32>
    %c0_74 = arith.constant 0 : index
    %c0_75 = arith.constant 0 : index
    %69 = vector.load %arg5[%c0_74, %c0_75] : memref<1x32xf32, #tpu.memory_space<vmem>>, vector<1x32xf32>
    %70 = vector.broadcast %69 : vector<1x32xf32> to vector<2x32xf32>
    %71 = arith.addf %68, %70 : vector<2x32xf32>
    %c0_76 = arith.constant 0 : index
    %c0_77 = arith.constant 0 : index
    %72 = vector.load %arg7[%c0_76, %c0_77] : memref<2x32xf32, #tpu.memory_space<vmem>>, vector<2x32xf32>
    tpu.vector_store %arg7[%c0_76, %c0_77], %71 {strides = array<i32>} : memref<2x32xf32, #tpu.memory_space<vmem>>, vector<2x32xf32>,
    return
  }
}

</mosaic_0001>

<llo_original>
// kernel: _forward.1
$region0: #{_forward.1}
  #allocation0 [shape = 'u32[]', space=smem, size = 0x4, offset = 0x4, fixed_abs, tag = 'smem constant byte address 0x4 - core index']
  #allocation1 [shape = 'u32[144,128]{1,0:T(1,128)}', space=vmem, size = 0x12000, scoped, tag = 'internal scratch']
  #allocation2 [shape = 'f32[16,128]{1,0:T(8,128)}', space=vmem, size = 0x2000, scoped, tag = 'scratch operand']
  %s0 = inlined_call_operand.vmem [shape: f32[2,18,72], index: 0, kind: input, shape index: {}]
  %s1 = inlined_call_operand.vmem [shape: f32[3,72,128], index: 1, kind: input, shape index: {}]
  %s2 = inlined_call_operand.vmem [shape: f32[1,128], index: 2, kind: input, shape index: {}]
  %s3 = inlined_call_operand.vmem [shape: f32[128,128], index: 3, kind: input, shape index: {}]
  %s4 = inlined_call_operand.vmem [shape: f32[8,128,32], index: 4, kind: input, shape index: {}]
  %s5 = inlined_call_operand.vmem [shape: f32[1,32], index: 5, kind: input, shape index: {}]
  %s6 = inlined_call_operand.vmem [shape: f32[32,128], index: 6, kind: output, shape index: {0}]
  %s7 = inlined_call_operand.hbm [shape: f32[2,32], index: 7, kind: output, shape index: {1}]
  %8 = xla_tuple %s6, %s7
  %s9 = sld [smem:[#allocation0]]
  $region42: #{_forward.1} parent=0
    _
  %s11 = ssub.s32 1, %s9
  %s12 = scalar_select 0, %s11, %s9
  $region1: #{_forward.1} parent=0
    #allocation3 [shape = 'u8[1024]{0}', space=vmem, size = 0x400, scoped, tag = 'output window, operand 1, single buffered']
    #allocation4 [shape = 's32[1]{0}', space=sflag, size = 0x4, scoped, tag = 'scoped memory for _forward.1']
    %13 = vsyncpa [#allocation4], 0
    // Predicated region
    $region2: #{_forward.1} parent=1 // pred_check
      _
    $region3: #{_forward.1} parent=1 // pred_check_branch
      %15 = sbr.rel (0) target = $region5
    $region4: #{_forward.1} parent=1 // pred_region
      _
    $region5: #{_forward.1} parent=1 // pred_fallthru
      _
    // Predicated region
    $region6: #{_forward.1} parent=1 // pred_check
      _
    $region7: #{_forward.1} parent=1 // pred_check_branch
      %17 = sbr.rel (0) target = $region9
    $region8: #{_forward.1} parent=1 // pred_region
      _
    $region9: #{_forward.1} parent=1 // pred_fallthru
      _
    // Predicated region
    $region10: #{_forward.1} parent=1 // pred_check
      _
    $region11: #{_forward.1} parent=1 // pred_check_branch
      %19 = sbr.rel (0) target = $region13
    $region12: #{_forward.1} parent=1 // pred_region
      _
    $region13: #{_forward.1} parent=1 // pred_fallthru
      _
    // Predicated region
    $region14: #{_forward.1} parent=1 // pred_check
      _
    $region15: #{_forward.1} parent=1 // pred_check_branch
      %21 = sbr.rel (0) target = $region17
    $region16: #{_forward.1} parent=1 // pred_region
      _
    $region17: #{_forward.1} parent=1 // pred_fallthru
      _
    // Predicated region
    $region18: #{_forward.1} parent=1 // pred_check
      _
    $region19: #{_forward.1} parent=1 // pred_check_branch
      %23 = sbr.rel (0) target = $region21
    $region20: #{_forward.1} parent=1 // pred_region
      _
    $region21: #{_forward.1} parent=1 // pred_fallthru
      _
    // Predicated region
    $region22: #{_forward.1} parent=1 // pred_check
      _
    $region23: #{_forward.1} parent=1 // pred_check_branch
      %25 = sbr.rel (0) target = $region25
    $region24: #{_forward.1} parent=1 // pred_region
      _
    $region25: #{_forward.1} parent=1 // pred_fallthru
      _
    %v26 = vld [vmem:[%s0] sm:$0xff]
    %v27 = vld [vmem:[%s0 + $0x8] sm:$0xff]
    %v28 = vld [vmem:[%s0 + $0x18] sm:$0xff]
    %v29 = vld [vmem:[%s0 + $0x20] sm:$0xff]
    %v30 = vld [vmem:[%s1] sm:$0xff]
    %v31 = vld [vmem:[%s1 + $0x8] sm:$0xff]
    %v32 = vld [vmem:[%s1 + $0x10] sm:$0xff]
    %v33 = vld [vmem:[%s1 + $0x18] sm:$0xff]
    %v34 = vld [vmem:[%s1 + $0x20] sm:$0xff]
    %v35 = vld [vmem:[%s1 + $0x28] sm:$0xff]
    %v36 = vld [vmem:[%s1 + $0x30] sm:$0xff]
    %v37 = vld [vmem:[%s1 + $0x38] sm:$0xff]
    %v38 = vld [vmem:[%s1 + $0x40] sm:$0xff]
    %v39 = vld [vmem:[%s0 + $0x1] sm:$0xff]
    %v40 = vld [vmem:[%s0 + $0x9] sm:$0xff]
    %v41 = vld [vmem:[%s0 + $0x19] sm:$0xff]
    %v42 = vld [vmem:[%s0 + $0x21] sm:$0xff]
    %s43 = scalar_lea.vmem %s1, 72
    %v44 = vld [vmem:[%s43] sm:$0xff]
    %v45 = vld [vmem:[%s43 + $0x8] sm:$0xff]
    %v46 = vld [vmem:[%s43 + $0x10] sm:$0xff]
    %v47 = vld [vmem:[%s43 + $0x18] sm:$0xff]
    %v48 = vld [vmem:[%s43 + $0x20] sm:$0xff]
    %v49 = vld [vmem:[%s43 + $0x28] sm:$0xff]
    %v50 = vld [vmem:[%s43 + $0x30] sm:$0xff]
    %v51 = vld [vmem:[%s43 + $0x38] sm:$0xff]
    %v52 = vld [vmem:[%s43 + $0x40] sm:$0xff]
    %vm53 = vcmask 588800
    %v55 = vsel %vm53, %v39, 0
    %v58 = vsel %vm53, %v40, 0
    %v61 = vsel %vm53, %v41, 0
    %v64 = vsel %vm53, %v42, 0
    %66 = vmatprep.subr.mxu0 0.0
    %67 = vmatpush1.msra.mxu0 %v44
    %68 = vmatprep.subr.mxu0 0.0
    %69 = vmatpush1.msra.mxu0 %v45
    %70 = vmatprep.subr.mxu0 0.0
    %71 = vmatpush1.msra.mxu0 %v46
    %72 = vmatprep.subr.mxu0 0.0
    %73 = vmatpush1.msra.mxu0 %v47
    %74 = vmatprep.subr.mxu0 0.0
    %75 = vmatpush1.msra.mxu0 %v48
    %76 = vmatprep.subr.mxu0 0.0
    %77 = vmatpush1.msra.mxu0 %v49
    %78 = vmatprep.subr.mxu0 0.0
    %79 = vmatpush1.msra.mxu0 %v50
    %80 = vmatprep.subr.mxu0 0.0
    %81 = vmatpush1.msra.mxu0 %v51
    %82 = vmatprep.subr.mxu0 0.0
    %83 = vmatpush1.msra.mxu0 %v52
    %84 = vmatprep.subr.mxu0 0.0
    %85 = vmatpush1.msra.mxu0 0.0
    %86 = vmatprep.subr.mxu0 0.0
    %87 = vmatpush1.msra.mxu0 0.0
    %88 = vmatprep.subr.mxu0 0.0
    %89 = vmatpush1.msra.mxu0 0.0
    %90 = vmatprep.subr.mxu0 0.0
    %91 = vmatpush1.msra.mxu0 0.0
    %92 = vmatprep.subr.mxu0 0.0
    %93 = vmatpush1.msra.mxu0 0.0
    %94 = vmatprep.subr.mxu0 0.0
    %95 = vmatpush1.msra.mxu0 0.0
    %96 = vmatprep.subr.mxu0 0.0
    %97 = vmatpush1.msra.mxu0 0.0
    %98 = vmatprep.subr.mxu0 0.0
    %99 = vmatpush1.msra.mxu0 0.0
    %100 = vmatprep.subr.mxu0 0.0
    %101 = vmatpush1.msra.mxu0 0.0
    %102 = vmatprep.subr.mxu0 0.0
    %103 = vmatpush1.msra.mxu0 0.0
    %104 = vmatprep.subr.mxu0 0.0
    %105 = vmatpush1.msra.mxu0 0.0
    %106 = vmatprep.subr.mxu0 0.0
    %107 = vmatpush1.msra.mxu0 0.0
    %108 = vmatprep.subr.mxu0 0.0
    %109 = vmatpush1.msra.mxu0 0.0
    %110 = vmatprep.subr.mxu0 0.0
    %111 = vmatpush1.msra.mxu0 0.0
    %112 = vmatprep.subr.mxu0 0.0
    %113 = vmatpush1.msra.mxu0 0.0
    %114 = vmatprep.subr.mxu0 0.0
    %115 = vmatpush1.msra.mxu0 0.0
    %116 = vmatprep.subr.mxu0 0.0
    %117 = vmatpush1.msra.mxu0 0.0
    %118 = vmatprep.subr.mxu0 0.0
    %119 = vmatpush1.msra.mxu0 0.0
    %120 = vmatprep.subr.mxu0 0.0
    %121 = vmatpush1.msra.mxu0 0.0
    %122 = vmatprep.subr.mxu0 0.0
    %123 = vmatpush1.msra.mxu0 0.0
    %124 = vmatprep.subr.mxu0 0.0
    %125 = vmatpush1.msra.mxu0 0.0
    %126 = vmatprep.subr.mxu0 0.0
    %127 = vmatpush1.msra.mxu0 0.0
    %128 = vmatprep.subr.mxu0 0.0
    %129 = vmatpush1.msra.mxu0 0.0
    %130 = vmatprep.mubr.f32.mxu0 0.0
    %131 = vmatmul.mubr.f32.gmra.mrb[0].mxu0 %v55
    %v132 = vpop.f32.mrb[0].mxu0
    %v133 = vadd.f32 0.0, %v132
    %v134 = vpop.f32.mrb[0].mxu0
    %135 = vmatprep.mubr.f32.mxu0 0.0
    %136 = vmatmul.mubr.f32.gmra.mrb[0].mxu0 %v58
    %v137 = vpop.f32.mrb[0].mxu0
    %v138 = vadd.f32 0.0, %v137
    %v139 = vpop.f32.mrb[0].mxu0
    %140 = vmatprep.mubr.f32.mxu0 0.0
    %141 = vmatmul.mubr.f32.gmra.mrb[0].mxu0 %v61
    %v142 = vpop.f32.mrb[0].mxu0
    %v143 = vadd.f32 0.0, %v142
    %v144 = vpop.f32.mrb[0].mxu0
    %145 = vmatprep.mubr.f32.mxu0 0.0
    %146 = vmatmul.mubr.f32.gmra.mrb[0].mxu0 %v64
    %v147 = vpop.f32.mrb[0].mxu0
    %v148 = vadd.f32 0.0, %v147
    %v149 = vpop.f32.mrb[0].mxu0
    %150 = vdwg.mxu0
    %v152 = vsel %vm53, %v26, 0
    %v155 = vsel %vm53, %v27, 0
    %v158 = vsel %vm53, %v28, 0
    %v161 = vsel %vm53, %v29, 0
    %163 = vmatprep.subr.mxu0 0.0
    %164 = vmatpush1.msra.mxu0 %v30
    %165 = vmatprep.subr.mxu0 0.0
    %166 = vmatpush1.msra.mxu0 %v31
    %167 = vmatprep.subr.mxu0 0.0
    %168 = vmatpush1.msra.mxu0 %v32
    %169 = vmatprep.subr.mxu0 0.0
    %170 = vmatpush1.msra.mxu0 %v33
    %171 = vmatprep.subr.mxu0 0.0
    %172 = vmatpush1.msra.mxu0 %v34
    %173 = vmatprep.subr.mxu0 0.0
    %174 = vmatpush1.msra.mxu0 %v35
    %175 = vmatprep.subr.mxu0 0.0
    %176 = vmatpush1.msra.mxu0 %v36
    %177 = vmatprep.subr.mxu0 0.0
    %178 = vmatpush1.msra.mxu0 %v37
    %179 = vmatprep.subr.mxu0 0.0
    %180 = vmatpush1.msra.mxu0 %v38
    %181 = vmatprep.subr.mxu0 0.0
    %182 = vmatpush1.msra.mxu0 0.0
    %183 = vmatprep.subr.mxu0 0.0
    %184 = vmatpush1.msra.mxu0 0.0
    %185 = vmatprep.subr.mxu0 0.0
    %186 = vmatpush1.msra.mxu0 0.0
    %187 = vmatprep.subr.mxu0 0.0
    %188 = vmatpush1.msra.mxu0 0.0
    %189 = vmatprep.subr.mxu0 0.0
    %190 = vmatpush1.msra.mxu0 0.0
    %191 = vmatprep.subr.mxu0 0.0
    %192 = vmatpush1.msra.mxu0 0.0
    %193 = vmatprep.subr.mxu0 0.0
    %194 = vmatpush1.msra.mxu0 0.0
    %195 = vmatprep.subr.mxu0 0.0
    %196 = vmatpush1.msra.mxu0 0.0
    %197 = vmatprep.subr.mxu0 0.0
    %198 = vmatpush1.msra.mxu0 0.0
    %199 = vmatprep.subr.mxu0 0.0
    %200 = vmatpush1.msra.mxu0 0.0
    %201 = vmatprep.subr.mxu0 0.0
    %202 = vmatpush1.msra.mxu0 0.0
    %203 = vmatprep.subr.mxu0 0.0
    %204 = vmatpush1.msra.mxu0 0.0
    %205 = vmatprep.subr.mxu0 0.0
    %206 = vmatpush1.msra.mxu0 0.0
    %207 = vmatprep.subr.mxu0 0.0
    %208 = vmatpush1.msra.mxu0 0.0
    %209 = vmatprep.subr.mxu0 0.0
    %210 = vmatpush1.msra.mxu0 0.0
    %211 = vmatprep.subr.mxu0 0.0
    %212 = vmatpush1.msra.mxu0 0.0
    %213 = vmatprep.subr.mxu0 0.0
    %214 = vmatpush1.msra.mxu0 0.0
    %215 = vmatprep.subr.mxu0 0.0
    %216 = vmatpush1.msra.mxu0 0.0
    %217 = vmatprep.subr.mxu0 0.0
    %218 = vmatpush1.msra.mxu0 0.0
    %219 = vmatprep.subr.mxu0 0.0
    %220 = vmatpush1.msra.mxu0 0.0
    %221 = vmatprep.subr.mxu0 0.0
    %222 = vmatpush1.msra.mxu0 0.0
    %223 = vmatprep.subr.mxu0 0.0
    %224 = vmatpush1.msra.mxu0 0.0
    %225 = vmatprep.subr.mxu0 0.0
    %226 = vmatpush1.msra.mxu0 0.0
    %227 = vmatprep.mubr.f32.mxu0 0.0
    %228 = vmatmul.mubr.f32.gmra.mrb[0].mxu0 %v152
    %v229 = vpop.f32.mrb[0].mxu0
    %v230 = vadd.f32 %v133, %v229
    %v231 = vpop.f32.mrb[0].mxu0
    %232 = vmatprep.mubr.f32.mxu0 0.0
    %233 = vmatmul.mubr.f32.gmra.mrb[0].mxu0 %v155
    %v234 = vpop.f32.mrb[0].mxu0
    %v235 = vadd.f32 %v138, %v234
    %v236 = vpop.f32.mrb[0].mxu0
    %237 = vmatprep.mubr.f32.mxu0 0.0
    %238 = vmatmul.mubr.f32.gmra.mrb[0].mxu0 %v158
    %v239 = vpop.f32.mrb[0].mxu0
    %v240 = vadd.f32 %v143, %v239
    %v241 = vpop.f32.mrb[0].mxu0
    %242 = vmatprep.mubr.f32.mxu0 0.0
    %243 = vmatmul.mubr.f32.gmra.mrb[0].mxu0 %v161
    %v244 = vpop.f32.mrb[0].mxu0
    %v245 = vadd.f32 %v148, %v244
    %v246 = vpop.f32.mrb[0].mxu0
    %247 = vdwg.mxu0
    %v248 = vld [vmem:[%s0 + $0x2] sm:$0xff]
    %v249 = vld [vmem:[%s0 + $0xa] sm:$0xff]
    %v250 = vld [vmem:[%s0 + $0x1a] sm:$0xff]
    %v251 = vld [vmem:[%s0 + $0x22] sm:$0xff]
    %s252 = scalar_lea.vmem %s1, 144
    %v253 = vld [vmem:[%s252] sm:$0xff]
    %v254 = vld [vmem:[%s252 + $0x8] sm:$0xff]
    %v255 = vld [vmem:[%s252 + $0x10] sm:$0xff]
    %v256 = vld [vmem:[%s252 + $0x18] sm:$0xff]
    %v257 = vld [vmem:[%s252 + $0x20] sm:$0xff]
    %v258 = vld [vmem:[%s252 + $0x28] sm:$0xff]
    %v259 = vld [vmem:[%s252 + $0x30] sm:$0xff]
    %v260 = vld [vmem:[%s252 + $0x38] sm:$0xff]
    %v261 = vld [vmem:[%s252 + $0x40] sm:$0xff]
    %v263 = vsel %vm53, %v248, 0
    %v266 = vsel %vm53, %v249, 0
    %v269 = vsel %vm53, %v250, 0
    %v272 = vsel %vm53, %v251, 0
    %274 = vmatprep.subr.mxu0 0.0
    %275 = vmatpush1.msra.mxu0 %v253
    %276 = vmatprep.subr.mxu0 0.0
    %277 = vmatpush1.msra.mxu0 %v254
    %278 = vmatprep.subr.mxu0 0.0
    %279 = vmatpush1.msra.mxu0 %v255
    %280 = vmatprep.subr.mxu0 0.0
    %281 = vmatpush1.msra.mxu0 %v256
    %282 = vmatprep.subr.mxu0 0.0
    %283 = vmatpush1.msra.mxu0 %v257
    %284 = vmatprep.subr.mxu0 0.0
    %285 = vmatpush1.msra.mxu0 %v258
    %286 = vmatprep.subr.mxu0 0.0
    %287 = vmatpush1.msra.mxu0 %v259
    %288 = vmatprep.subr.mxu0 0.0
    %289 = vmatpush1.msra.mxu0 %v260
    %290 = vmatprep.subr.mxu0 0.0
    %291 = vmatpush1.msra.mxu0 %v261
    %292 = vmatprep.subr.mxu0 0.0
    %293 = vmatpush1.msra.mxu0 0.0
    %294 = vmatprep.subr.mxu0 0.0
    %295 = vmatpush1.msra.mxu0 0.0
    %296 = vmatprep.subr.mxu0 0.0
    %297 = vmatpush1.msra.mxu0 0.0
    %298 = vmatprep.subr.mxu0 0.0
    %299 = vmatpush1.msra.mxu0 0.0
    %300 = vmatprep.subr.mxu0 0.0
    %301 = vmatpush1.msra.mxu0 0.0
    %302 = vmatprep.subr.mxu0 0.0
    %303 = vmatpush1.msra.mxu0 0.0
    %304 = vmatprep.subr.mxu0 0.0
    %305 = vmatpush1.msra.mxu0 0.0
    %306 = vmatprep.subr.mxu0 0.0
    %307 = vmatpush1.msra.mxu0 0.0
    %308 = vmatprep.subr.mxu0 0.0
    %309 = vmatpush1.msra.mxu0 0.0
    %310 = vmatprep.subr.mxu0 0.0
    %311 = vmatpush1.msra.mxu0 0.0
    %312 = vmatprep.subr.mxu0 0.0
    %313 = vmatpush1.msra.mxu0 0.0
    %314 = vmatprep.subr.mxu0 0.0
    %315 = vmatpush1.msra.mxu0 0.0
    %316 = vmatprep.subr.mxu0 0.0
    %317 = vmatpush1.msra.mxu0 0.0
    %318 = vmatprep.subr.mxu0 0.0
    %319 = vmatpush1.msra.mxu0 0.0
    %320 = vmatprep.subr.mxu0 0.0
    %321 = vmatpush1.msra.mxu0 0.0
    %322 = vmatprep.subr.mxu0 0.0
    %323 = vmatpush1.msra.mxu0 0.0
    %324 = vmatprep.subr.mxu0 0.0
    %325 = vmatpush1.msra.mxu0 0.0
    %326 = vmatprep.subr.mxu0 0.0
    %327 = vmatpush1.msra.mxu0 0.0
    %328 = vmatprep.subr.mxu0 0.0
    %329 = vmatpush1.msra.mxu0 0.0
    %330 = vmatprep.subr.mxu0 0.0
    %331 = vmatpush1.msra.mxu0 0.0
    %332 = vmatprep.subr.mxu0 0.0
    %333 = vmatpush1.msra.mxu0 0.0
    %334 = vmatprep.subr.mxu0 0.0
    %335 = vmatpush1.msra.mxu0 0.0
    %336 = vmatprep.subr.mxu0 0.0
    %337 = vmatpush1.msra.mxu0 0.0
    %338 = vmatprep.mubr.f32.mxu0 0.0
    %339 = vmatmul.mubr.f32.gmra.mrb[0].mxu0 %v263
    %v340 = vpop.f32.mrb[0].mxu0
    %v341 = vadd.f32 0.0, %v340
    %v342 = vpop.f32.mrb[0].mxu0
    %343 = vmatprep.mubr.f32.mxu0 0.0
    %344 = vmatmul.mubr.f32.gmra.mrb[0].mxu0 %v266
    %v345 = vpop.f32.mrb[0].mxu0
    %v346 = vadd.f32 0.0, %v345
    %v347 = vpop.f32.mrb[0].mxu0
    %348 = vmatprep.mubr.f32.mxu0 0.0
    %349 = vmatmul.mubr.f32.gmra.mrb[0].mxu0 %v269
    %v350 = vpop.f32.mrb[0].mxu0
    %v351 = vadd.f32 0.0, %v350
    %v352 = vpop.f32.mrb[0].mxu0
    %353 = vmatprep.mubr.f32.mxu0 0.0
    %354 = vmatmul.mubr.f32.gmra.mrb[0].mxu0 %v272
    %v355 = vpop.f32.mrb[0].mxu0
    %v356 = vadd.f32 0.0, %v355
    %v357 = vpop.f32.mrb[0].mxu0
    %358 = vdwg.mxu0
    %v359 = vadd.f32 %v230, %v341
    %v360 = vadd.f32 %v235, %v346
    %v361 = vadd.f32 %v240, %v351
    %v362 = vadd.f32 %v245, %v356
    %v363 = vld [vmem:[%s2] sm:$0x1]
    %v365 = vlaneseq
    %v366 = vshrl.u32 %v365, 7
    %v367 = vsub.s32 0, %v366
    %v368 = vrot.slane %v363, %v367
    %v370 = vadd.f32 %v359, %v368
    %v371 = vadd.f32 %v360, %v368
    %v372 = vadd.f32 %v361, %v368
    %v373 = vadd.f32 %v362, %v368
    %374 = vst [vmem:[%s6] sm:$0xff] %v370
    %375 = vst [vmem:[%s6 + $0x8] sm:$0xff] %v371
    %376 = vst [vmem:[%s6 + $0x10] sm:$0xff] %v372
    %377 = vst [vmem:[%s6 + $0x18] sm:$0xff] %v373
    %v378 = vld [vmem:[%s6] ss:$2 sm:$0xff]
    %s379 = scalar_lea.vmem %s6, 16
    %v380 = vld [vmem:[%s379] ss:$2 sm:$0xff]
    %s381 = scalar_lea.vmem %s6, 1
    %v382 = vld [vmem:[%s381] ss:$2 sm:$0xff]
    %s383 = scalar_lea.vmem %s6, 17
    %v384 = vld [vmem:[%s383] ss:$2 sm:$0xff]
    %v385 = vmax.f32 %v378, %v382
    %v386 = vmax.f32 %v380, %v384
    %v387 = vmax.f32 %v385, 0.0
    %v388 = vmax.f32 %v386, 0.0
    %v389 = vld [vmem:[%s3] sm:$0xff]
    %v390 = vld [vmem:[%s3 + $0x8] sm:$0xff]
    %v391 = vld [vmem:[%s3 + $0x10] sm:$0xff]
    %v392 = vld [vmem:[%s3 + $0x18] sm:$0xff]
    %v393 = vld [vmem:[%s3 + $0x20] sm:$0xff]
    %v394 = vld [vmem:[%s3 + $0x28] sm:$0xff]
    %v395 = vld [vmem:[%s3 + $0x30] sm:$0xff]
    %v396 = vld [vmem:[%s3 + $0x38] sm:$0xff]
    %v397 = vld [vmem:[%s3 + $0x40] sm:$0xff]
    %v398 = vld [vmem:[%s3 + $0x48] sm:$0xff]
    %v399 = vld [vmem:[%s3 + $0x50] sm:$0xff]
    %v400 = vld [vmem:[%s3 + $0x58] sm:$0xff]
    %v401 = vld [vmem:[%s3 + $0x60] sm:$0xff]
    %v402 = vld [vmem:[%s3 + $0x68] sm:$0xff]
    %v403 = vld [vmem:[%s3 + $0x70] sm:$0xff]
    %v404 = vld [vmem:[%s3 + $0x78] sm:$0xff]
    %405 = vmatprep.subr.mxu0 0.0
    %406 = vmatpush1.msra.mxu0 %v389
    %407 = vmatprep.subr.mxu0 0.0
    %408 = vmatpush1.msra.mxu0 %v390
    %409 = vmatprep.subr.mxu0 0.0
    %410 = vmatpush1.msra.mxu0 %v391
    %411 = vmatprep.subr.mxu0 0.0
    %412 = vmatpush1.msra.mxu0 %v392
    %413 = vmatprep.subr.mxu0 0.0
    %414 = vmatpush1.msra.mxu0 %v393
    %415 = vmatprep.subr.mxu0 0.0
    %416 = vmatpush1.msra.mxu0 %v394
    %417 = vmatprep.subr.mxu0 0.0
    %418 = vmatpush1.msra.mxu0 %v395
    %419 = vmatprep.subr.mxu0 0.0
    %420 = vmatpush1.msra.mxu0 %v396
    %421 = vmatprep.subr.mxu0 0.0
    %422 = vmatpush1.msra.mxu0 %v397
    %423 = vmatprep.subr.mxu0 0.0
    %424 = vmatpush1.msra.mxu0 %v398
    %425 = vmatprep.subr.mxu0 0.0
    %426 = vmatpush1.msra.mxu0 %v399
    %427 = vmatprep.subr.mxu0 0.0
    %428 = vmatpush1.msra.mxu0 %v400
    %429 = vmatprep.subr.mxu0 0.0
    %430 = vmatpush1.msra.mxu0 %v401
    %431 = vmatprep.subr.mxu0 0.0
    %432 = vmatpush1.msra.mxu0 %v402
    %433 = vmatprep.subr.mxu0 0.0
    %434 = vmatpush1.msra.mxu0 %v403
    %435 = vmatprep.subr.mxu0 0.0
    %436 = vmatpush1.msra.mxu0 %v404
    %437 = vmatprep.subr.mxu0 0.0
    %438 = vmatpush1.msra.mxu0 0.0
    %439 = vmatprep.subr.mxu0 0.0
    %440 = vmatpush1.msra.mxu0 0.0
    %441 = vmatprep.subr.mxu0 0.0
    %442 = vmatpush1.msra.mxu0 0.0
    %443 = vmatprep.subr.mxu0 0.0
    %444 = vmatpush1.msra.mxu0 0.0
    %445 = vmatprep.subr.mxu0 0.0
    %446 = vmatpush1.msra.mxu0 0.0
    %447 = vmatprep.subr.mxu0 0.0
    %448 = vmatpush1.msra.mxu0 0.0
    %449 = vmatprep.subr.mxu0 0.0
    %450 = vmatpush1.msra.mxu0 0.0
    %451 = vmatprep.subr.mxu0 0.0
    %452 = vmatpush1.msra.mxu0 0.0
    %453 = vmatprep.subr.mxu0 0.0
    %454 = vmatpush1.msra.mxu0 0.0
    %455 = vmatprep.subr.mxu0 0.0
    %456 = vmatpush1.msra.mxu0 0.0
    %457 = vmatprep.subr.mxu0 0.0
    %458 = vmatpush1.msra.mxu0 0.0
    %459 = vmatprep.subr.mxu0 0.0
    %460 = vmatpush1.msra.mxu0 0.0
    %461 = vmatprep.subr.mxu0 0.0
    %462 = vmatpush1.msra.mxu0 0.0
    %463 = vmatprep.subr.mxu0 0.0
    %464 = vmatpush1.msra.mxu0 0.0
    %465 = vmatprep.subr.mxu0 0.0
    %466 = vmatpush1.msra.mxu0 0.0
    %467 = vmatprep.subr.mxu0 0.0
    %468 = vmatpush1.msra.mxu0 0.0
    %469 = vmatprep.mubr.f32.mxu0 0.0
    %470 = vmatmul.mubr.f32.gmra.mrb[0].mxu0 %v387
    %v471 = vpop.f32.mrb[0].mxu0
    %v472 = vadd.f32 0.0, %v471
    %v473 = vpop.f32.mrb[0].mxu0
    %474 = vmatprep.mubr.f32.mxu0 0.0
    %475 = vmatmul.mubr.f32.gmra.mrb[0].mxu0 %v388
    %v476 = vpop.f32.mrb[0].mxu0
    %v477 = vadd.f32 0.0, %v476
    %v478 = vpop.f32.mrb[0].mxu0
    %479 = vdwg.mxu0
    %v480 = vmax.f32 %v387, %v472
    %v481 = vmax.f32 %v388, %v477
    %482 = vst [vmem:[#allocation2] sm:$0xff] %v480
    %483 = vst [vmem:[#allocation2 + $0x8] sm:$0xff] %v481
    %v484 = vld [vmem:[#allocation2] ss:$8 sm:$0x3]
    %v485 = vld [vmem:[%s4] sm:$0xff]
    %v486 = vld [vmem:[%s4 + $0x8] sm:$0xff]
    %v487 = vld [vmem:[%s4 + $0x10] sm:$0xff]
    %v488 = vld [vmem:[%s4 + $0x18] sm:$0xff]
    %v489 = vld [vmem:[%s4 + $0x20] sm:$0xff]
    %v490 = vld [vmem:[%s4 + $0x28] sm:$0xff]
    %v491 = vld [vmem:[%s4 + $0x30] sm:$0xff]
    %v492 = vld [vmem:[%s4 + $0x38] sm:$0xff]
    %v493 = vld [vmem:[%s4 + $0x40] sm:$0xff]
    %v494 = vld [vmem:[%s4 + $0x48] sm:$0xff]
    %v495 = vld [vmem:[%s4 + $0x50] sm:$0xff]
    %v496 = vld [vmem:[%s4 + $0x58] sm:$0xff]
    %v497 = vld [vmem:[%s4 + $0x60] sm:$0xff]
    %v498 = vld [vmem:[%s4 + $0x68] sm:$0xff]
    %v499 = vld [vmem:[%s4 + $0x70] sm:$0xff]
    %v500 = vld [vmem:[%s4 + $0x78] sm:$0xff]
    %s501 = scalar_lea.vmem [#allocation2], 1
    %v502 = vld [vmem:[%s501] ss:$8 sm:$0x3]
    %s503 = scalar_lea.vmem %s4, 128
    %v504 = vld [vmem:[%s503] sm:$0xff]
    %v505 = vld [vmem:[%s503 + $0x8] sm:$0xff]
    %v506 = vld [vmem:[%s503 + $0x10] sm:$0xff]
    %v507 = vld [vmem:[%s503 + $0x18] sm:$0xff]
    %v508 = vld [vmem:[%s503 + $0x20] sm:$0xff]
    %v509 = vld [vmem:[%s503 + $0x28] sm:$0xff]
    %v510 = vld [vmem:[%s503 + $0x30] sm:$0xff]
    %v511 = vld [vmem:[%s503 + $0x38] sm:$0xff]
    %v512 = vld [vmem:[%s503 + $0x40] sm:$0xff]
    %v513 = vld [vmem:[%s503 + $0x48] sm:$0xff]
    %v514 = vld [vmem:[%s503 + $0x50] sm:$0xff]
    %v515 = vld [vmem:[%s503 + $0x58] sm:$0xff]
    %v516 = vld [vmem:[%s503 + $0x60] sm:$0xff]
    %v517 = vld [vmem:[%s503 + $0x68] sm:$0xff]
    %v518 = vld [vmem:[%s503 + $0x70] sm:$0xff]
    %v519 = vld [vmem:[%s503 + $0x78] sm:$0xff]
    %520 = vmatprep.subr.mxu0 0.0
    %521 = vmatpush1.msra.mxu0 %v504
    %522 = vmatprep.subr.mxu0 0.0
    %523 = vmatpush1.msra.mxu0 %v505
    %524 = vmatprep.subr.mxu0 0.0
    %525 = vmatpush1.msra.mxu0 %v506
    %526 = vmatprep.subr.mxu0 0.0
    %527 = vmatpush1.msra.mxu0 %v507
    %528 = vmatprep.subr.mxu0 0.0
    %529 = vmatpush1.msra.mxu0 %v508
    %530 = vmatprep.subr.mxu0 0.0
    %531 = vmatpush1.msra.mxu0 %v509
    %532 = vmatprep.subr.mxu0 0.0
    %533 = vmatpush1.msra.mxu0 %v510
    %534 = vmatprep.subr.mxu0 0.0
    %535 = vmatpush1.msra.mxu0 %v511
    %536 = vmatprep.subr.mxu0 0.0
    %537 = vmatpush1.msra.mxu0 %v512
    %538 = vmatprep.subr.mxu0 0.0
    %539 = vmatpush1.msra.mxu0 %v513
    %540 = vmatprep.subr.mxu0 0.0
    %541 = vmatpush1.msra.mxu0 %v514
    %542 = vmatprep.subr.mxu0 0.0
    %543 = vmatpush1.msra.mxu0 %v515
    %544 = vmatprep.subr.mxu0 0.0
    %545 = vmatpush1.msra.mxu0 %v516
    %546 = vmatprep.subr.mxu0 0.0
    %547 = vmatpush1.msra.mxu0 %v517
    %548 = vmatprep.subr.mxu0 0.0
    %549 = vmatpush1.msra.mxu0 %v518
    %550 = vmatprep.subr.mxu0 0.0
    %551 = vmatpush1.msra.mxu0 %v519
    %552 = vmatprep.subr.mxu0 0.0
    %553 = vmatpush1.msra.mxu0 0.0
    %554 = vmatprep.subr.mxu0 0.0
    %555 = vmatpush1.msra.mxu0 0.0
    %556 = vmatprep.subr.mxu0 0.0
    %557 = vmatpush1.msra.mxu0 0.0
    %558 = vmatprep.subr.mxu0 0.0
    %559 = vmatpush1.msra.mxu0 0.0
    %560 = vmatprep.subr.mxu0 0.0
    %561 = vmatpush1.msra.mxu0 0.0
    %562 = vmatprep.subr.mxu0 0.0
    %563 = vmatpush1.msra.mxu0 0.0
    %564 = vmatprep.subr.mxu0 0.0
    %565 = vmatpush1.msra.mxu0 0.0
    %566 = vmatprep.subr.mxu0 0.0
    %567 = vmatpush1.msra.mxu0 0.0
    %568 = vmatprep.subr.mxu0 0.0
    %569 = vmatpush1.msra.mxu0 0.0
    %570 = vmatprep.subr.mxu0 0.0
    %571 = vmatpush1.msra.mxu0 0.0
    %572 = vmatprep.subr.mxu0 0.0
    %573 = vmatpush1.msra.mxu0 0.0
    %574 = vmatprep.subr.mxu0 0.0
    %575 = vmatpush1.msra.mxu0 0.0
    %576 = vmatprep.subr.mxu0 0.0
    %577 = vmatpush1.msra.mxu0 0.0
    %578 = vmatprep.subr.mxu0 0.0
    %579 = vmatpush1.msra.mxu0 0.0
    %580 = vmatprep.subr.mxu0 0.0
    %581 = vmatpush1.msra.mxu0 0.0
    %582 = vmatprep.subr.mxu0 0.0
    %583 = vmatpush1.msra.mxu0 0.0
    %584 = vmatprep.mubr.f32.mxu0 0.0
    %585 = vmatmul.mubr.f32.gmra.mrb[0].mxu0 %v502
    %v586 = vpop.f32.mrb[0].mxu0
    %v587 = vadd.f32 0.0, %v586
    %v588 = vpop.f32.mrb[0].mxu0
    %589 = vdwg.mxu0
    %590 = vmatprep.subr.mxu0 0.0
    %591 = vmatpush1.msra.mxu0 %v485
    %592 = vmatprep.subr.mxu0 0.0
    %593 = vmatpush1.msra.mxu0 %v486
    %594 = vmatprep.subr.mxu0 0.0
    %595 = vmatpush1.msra.mxu0 %v487
    %596 = vmatprep.subr.mxu0 0.0
    %597 = vmatpush1.msra.mxu0 %v488
    %598 = vmatprep.subr.mxu0 0.0
    %599 = vmatpush1.msra.mxu0 %v489
    %600 = vmatprep.subr.mxu0 0.0
    %601 = vmatpush1.msra.mxu0 %v490
    %602 = vmatprep.subr.mxu0 0.0
    %603 = vmatpush1.msra.mxu0 %v491
    %604 = vmatprep.subr.mxu0 0.0
    %605 = vmatpush1.msra.mxu0 %v492
    %606 = vmatprep.subr.mxu0 0.0
    %607 = vmatpush1.msra.mxu0 %v493
    %608 = vmatprep.subr.mxu0 0.0
    %609 = vmatpush1.msra.mxu0 %v494
    %610 = vmatprep.subr.mxu0 0.0
    %611 = vmatpush1.msra.mxu0 %v495
    %612 = vmatprep.subr.mxu0 0.0
    %613 = vmatpush1.msra.mxu0 %v496
    %614 = vmatprep.subr.mxu0 0.0
    %615 = vmatpush1.msra.mxu0 %v497
    %616 = vmatprep.subr.mxu0 0.0
    %617 = vmatpush1.msra.mxu0 %v498
    %618 = vmatprep.subr.mxu0 0.0
    %619 = vmatpush1.msra.mxu0 %v499
    %620 = vmatprep.subr.mxu0 0.0
    %621 = vmatpush1.msra.mxu0 %v500
    %622 = vmatprep.subr.mxu0 0.0
    %623 = vmatpush1.msra.mxu0 0.0
    %624 = vmatprep.subr.mxu0 0.0
    %625 = vmatpush1.msra.mxu0 0.0
    %626 = vmatprep.subr.mxu0 0.0
    %627 = vmatpush1.msra.mxu0 0.0
    %628 = vmatprep.subr.mxu0 0.0
    %629 = vmatpush1.msra.mxu0 0.0
    %630 = vmatprep.subr.mxu0 0.0
    %631 = vmatpush1.msra.mxu0 0.0
    %632 = vmatprep.subr.mxu0 0.0
    %633 = vmatpush1.msra.mxu0 0.0
    %634 = vmatprep.subr.mxu0 0.0
    %635 = vmatpush1.msra.mxu0 0.0
    %636 = vmatprep.subr.mxu0 0.0
    %637 = vmatpush1.msra.mxu0 0.0
    %638 = vmatprep.subr.mxu0 0.0
    %639 = vmatpush1.msra.mxu0 0.0
    %640 = vmatprep.subr.mxu0 0.0
    %641 = vmatpush1.msra.mxu0 0.0
    %642 = vmatprep.subr.mxu0 0.0
    %643 = vmatpush1.msra.mxu0 0.0
    %644 = vmatprep.subr.mxu0 0.0
    %645 = vmatpush1.msra.mxu0 0.0
    %646 = vmatprep.subr.mxu0 0.0
    %647 = vmatpush1.msra.mxu0 0.0
    %648 = vmatprep.subr.mxu0 0.0
    %649 = vmatpush1.msra.mxu0 0.0
    %650 = vmatprep.subr.mxu0 0.0
    %651 = vmatpush1.msra.mxu0 0.0
    %652 = vmatprep.subr.mxu0 0.0
    %653 = vmatpush1.msra.mxu0 0.0
    %654 = vmatprep.mubr.f32.mxu0 0.0
    %655 = vmatmul.mubr.f32.gmra.mrb[0].mxu0 %v484
    %v656 = vpop.f32.mrb[0].mxu0
    %v657 = vadd.f32 %v587, %v656
    %v658 = vpop.f32.mrb[0].mxu0
    %659 = vdwg.mxu0
    %s660 = scalar_lea.vmem [#allocation2], 2
    %v661 = vld [vmem:[%s660] ss:$8 sm:$0x3]
    %s662 = scalar_lea.vmem %s4, 256
    %v663 = vld [vmem:[%s662] sm:$0xff]
    %v664 = vld [vmem:[%s662 + $0x8] sm:$0xff]
    %v665 = vld [vmem:[%s662 + $0x10] sm:$0xff]
    %v666 = vld [vmem:[%s662 + $0x18] sm:$0xff]
    %v667 = vld [vmem:[%s662 + $0x20] sm:$0xff]
    %v668 = vld [vmem:[%s662 + $0x28] sm:$0xff]
    %v669 = vld [vmem:[%s662 + $0x30] sm:$0xff]
    %v670 = vld [vmem:[%s662 + $0x38] sm:$0xff]
    %v671 = vld [vmem:[%s662 + $0x40] sm:$0xff]
    %v672 = vld [vmem:[%s662 + $0x48] sm:$0xff]
    %v673 = vld [vmem:[%s662 + $0x50] sm:$0xff]
    %v674 = vld [vmem:[%s662 + $0x58] sm:$0xff]
    %v675 = vld [vmem:[%s662 + $0x60] sm:$0xff]
    %v676 = vld [vmem:[%s662 + $0x68] sm:$0xff]
    %v677 = vld [vmem:[%s662 + $0x70] sm:$0xff]
    %v678 = vld [vmem:[%s662 + $0x78] sm:$0xff]
    %679 = vmatprep.subr.mxu0 0.0
    %680 = vmatpush1.msra.mxu0 %v663
    %681 = vmatprep.subr.mxu0 0.0
    %682 = vmatpush1.msra.mxu0 %v664
    %683 = vmatprep.subr.mxu0 0.0
    %684 = vmatpush1.msra.mxu0 %v665
    %685 = vmatprep.subr.mxu0 0.0
    %686 = vmatpush1.msra.mxu0 %v666
    %687 = vmatprep.subr.mxu0 0.0
    %688 = vmatpush1.msra.mxu0 %v667
    %689 = vmatprep.subr.mxu0 0.0
    %690 = vmatpush1.msra.mxu0 %v668
    %691 = vmatprep.subr.mxu0 0.0
    %692 = vmatpush1.msra.mxu0 %v669
    %693 = vmatprep.subr.mxu0 0.0
    %694 = vmatpush1.msra.mxu0 %v670
    %695 = vmatprep.subr.mxu0 0.0
    %696 = vmatpush1.msra.mxu0 %v671
    %697 = vmatprep.subr.mxu0 0.0
    %698 = vmatpush1.msra.mxu0 %v672
    %699 = vmatprep.subr.mxu0 0.0
    %700 = vmatpush1.msra.mxu0 %v673
    %701 = vmatprep.subr.mxu0 0.0
    %702 = vmatpush1.msra.mxu0 %v674
    %703 = vmatprep.subr.mxu0 0.0
    %704 = vmatpush1.msra.mxu0 %v675
    %705 = vmatprep.subr.mxu0 0.0
    %706 = vmatpush1.msra.mxu0 %v676
    %707 = vmatprep.subr.mxu0 0.0
    %708 = vmatpush1.msra.mxu0 %v677
    %709 = vmatprep.subr.mxu0 0.0
    %710 = vmatpush1.msra.mxu0 %v678
    %711 = vmatprep.subr.mxu0 0.0
    %712 = vmatpush1.msra.mxu0 0.0
    %713 = vmatprep.subr.mxu0 0.0
    %714 = vmatpush1.msra.mxu0 0.0
    %715 = vmatprep.subr.mxu0 0.0
    %716 = vmatpush1.msra.mxu0 0.0
    %717 = vmatprep.subr.mxu0 0.0
    %718 = vmatpush1.msra.mxu0 0.0
    %719 = vmatprep.subr.mxu0 0.0
    %720 = vmatpush1.msra.mxu0 0.0
    %721 = vmatprep.subr.mxu0 0.0
    %722 = vmatpush1.msra.mxu0 0.0
    %723 = vmatprep.subr.mxu0 0.0
    %724 = vmatpush1.msra.mxu0 0.0
    %725 = vmatprep.subr.mxu0 0.0
    %726 = vmatpush1.msra.mxu0 0.0
    %727 = vmatprep.subr.mxu0 0.0
    %728 = vmatpush1.msra.mxu0 0.0
    %729 = vmatprep.subr.mxu0 0.0
    %730 = vmatpush1.msra.mxu0 0.0
    %731 = vmatprep.subr.mxu0 0.0
    %732 = vmatpush1.msra.mxu0 0.0
    %733 = vmatprep.subr.mxu0 0.0
    %734 = vmatpush1.msra.mxu0 0.0
    %735 = vmatprep.subr.mxu0 0.0
    %736 = vmatpush1.msra.mxu0 0.0
    %737 = vmatprep.subr.mxu0 0.0
    %738 = vmatpush1.msra.mxu0 0.0
    %739 = vmatprep.subr.mxu0 0.0
    %740 = vmatpush1.msra.mxu0 0.0
    %741 = vmatprep.subr.mxu0 0.0
    %742 = vmatpush1.msra.mxu0 0.0
    %743 = vmatprep.mubr.f32.mxu0 0.0
    %744 = vmatmul.mubr.f32.gmra.mrb[0].mxu0 %v661
    %v745 = vpop.f32.mrb[0].mxu0
    %v746 = vadd.f32 0.0, %v745
    %v747 = vpop.f32.mrb[0].mxu0
    %748 = vdwg.mxu0
    %v749 = vadd.f32 %v657, %v746
    %s750 = scalar_lea.vmem [#allocation2], 3
    %v751 = vld [vmem:[%s750] ss:$8 sm:$0x3]
    %s752 = scalar_lea.vmem %s4, 384
    %v753 = vld [vmem:[%s752] sm:$0xff]
    %v754 = vld [vmem:[%s752 + $0x8] sm:$0xff]
    %v755 = vld [vmem:[%s752 + $0x10] sm:$0xff]
    %v756 = vld [vmem:[%s752 + $0x18] sm:$0xff]
    %v757 = vld [vmem:[%s752 + $0x20] sm:$0xff]
    %v758 = vld [vmem:[%s752 + $0x28] sm:$0xff]
    %v759 = vld [vmem:[%s752 + $0x30] sm:$0xff]
    %v760 = vld [vmem:[%s752 + $0x38] sm:$0xff]
    %v761 = vld [vmem:[%s752 + $0x40] sm:$0xff]
    %v762 = vld [vmem:[%s752 + $0x48] sm:$0xff]
    %v763 = vld [vmem:[%s752 + $0x50] sm:$0xff]
    %v764 = vld [vmem:[%s752 + $0x58] sm:$0xff]
    %v765 = vld [vmem:[%s752 + $0x60] sm:$0xff]
    %v766 = vld [vmem:[%s752 + $0x68] sm:$0xff]
    %v767 = vld [vmem:[%s752 + $0x70] sm:$0xff]
    %v768 = vld [vmem:[%s752 + $0x78] sm:$0xff]
    %769 = vmatprep.subr.mxu0 0.0
    %770 = vmatpush1.msra.mxu0 %v753
    %771 = vmatprep.subr.mxu0 0.0
    %772 = vmatpush1.msra.mxu0 %v754
    %773 = vmatprep.subr.mxu0 0.0
    %774 = vmatpush1.msra.mxu0 %v755
    %775 = vmatprep.subr.mxu0 0.0
    %776 = vmatpush1.msra.mxu0 %v756
    %777 = vmatprep.subr.mxu0 0.0
    %778 = vmatpush1.msra.mxu0 %v757
    %779 = vmatprep.subr.mxu0 0.0
    %780 = vmatpush1.msra.mxu0 %v758
    %781 = vmatprep.subr.mxu0 0.0
    %782 = vmatpush1.msra.mxu0 %v759
    %783 = vmatprep.subr.mxu0 0.0
    %784 = vmatpush1.msra.mxu0 %v760
    %785 = vmatprep.subr.mxu0 0.0
    %786 = vmatpush1.msra.mxu0 %v761
    %787 = vmatprep.subr.mxu0 0.0
    %788 = vmatpush1.msra.mxu0 %v762
    %789 = vmatprep.subr.mxu0 0.0
    %790 = vmatpush1.msra.mxu0 %v763
    %791 = vmatprep.subr.mxu0 0.0
    %792 = vmatpush1.msra.mxu0 %v764
    %793 = vmatprep.subr.mxu0 0.0
    %794 = vmatpush1.msra.mxu0 %v765
    %795 = vmatprep.subr.mxu0 0.0
    %796 = vmatpush1.msra.mxu0 %v766
    %797 = vmatprep.subr.mxu0 0.0
    %798 = vmatpush1.msra.mxu0 %v767
    %799 = vmatprep.subr.mxu0 0.0
    %800 = vmatpush1.msra.mxu0 %v768
    %801 = vmatprep.subr.mxu0 0.0
    %802 = vmatpush1.msra.mxu0 0.0
    %803 = vmatprep.subr.mxu0 0.0
    %804 = vmatpush1.msra.mxu0 0.0
    %805 = vmatprep.subr.mxu0 0.0
    %806 = vmatpush1.msra.mxu0 0.0
    %807 = vmatprep.subr.mxu0 0.0
    %808 = vmatpush1.msra.mxu0 0.0
    %809 = vmatprep.subr.mxu0 0.0
    %810 = vmatpush1.msra.mxu0 0.0
    %811 = vmatprep.subr.mxu0 0.0
    %812 = vmatpush1.msra.mxu0 0.0
    %813 = vmatprep.subr.mxu0 0.0
    %814 = vmatpush1.msra.mxu0 0.0
    %815 = vmatprep.subr.mxu0 0.0
    %816 = vmatpush1.msra.mxu0 0.0
    %817 = vmatprep.subr.mxu0 0.0
    %818 = vmatpush1.msra.mxu0 0.0
    %819 = vmatprep.subr.mxu0 0.0
    %820 = vmatpush1.msra.mxu0 0.0
    %821 = vmatprep.subr.mxu0 0.0
    %822 = vmatpush1.msra.mxu0 0.0
    %823 = vmatprep.subr.mxu0 0.0
    %824 = vmatpush1.msra.mxu0 0.0
    %825 = vmatprep.subr.mxu0 0.0
    %826 = vmatpush1.msra.mxu0 0.0
    %827 = vmatprep.subr.mxu0 0.0
    %828 = vmatpush1.msra.mxu0 0.0
    %829 = vmatprep.subr.mxu0 0.0
    %830 = vmatpush1.msra.mxu0 0.0
    %831 = vmatprep.subr.mxu0 0.0
    %832 = vmatpush1.msra.mxu0 0.0
    %833 = vmatprep.mubr.f32.mxu0 0.0
    %834 = vmatmul.mubr.f32.gmra.mrb[0].mxu0 %v751
    %v835 = vpop.f32.mrb[0].mxu0
    %v836 = vadd.f32 0.0, %v835
    %v837 = vpop.f32.mrb[0].mxu0
    %838 = vdwg.mxu0
    %v839 = vadd.f32 %v749, %v836
    %s840 = scalar_lea.vmem [#allocation2], 4
    %v841 = vld [vmem:[%s840] ss:$8 sm:$0x3]
    %s842 = scalar_lea.vmem %s4, 512
    %v843 = vld [vmem:[%s842] sm:$0xff]
    %v844 = vld [vmem:[%s842 + $0x8] sm:$0xff]
    %v845 = vld [vmem:[%s842 + $0x10] sm:$0xff]
    %v846 = vld [vmem:[%s842 + $0x18] sm:$0xff]
    %v847 = vld [vmem:[%s842 + $0x20] sm:$0xff]
    %v848 = vld [vmem:[%s842 + $0x28] sm:$0xff]
    %v849 = vld [vmem:[%s842 + $0x30] sm:$0xff]
    %v850 = vld [vmem:[%s842 + $0x38] sm:$0xff]
    %v851 = vld [vmem:[%s842 + $0x40] sm:$0xff]
    %v852 = vld [vmem:[%s842 + $0x48] sm:$0xff]
    %v853 = vld [vmem:[%s842 + $0x50] sm:$0xff]
    %v854 = vld [vmem:[%s842 + $0x58] sm:$0xff]
    %v855 = vld [vmem:[%s842 + $0x60] sm:$0xff]
    %v856 = vld [vmem:[%s842 + $0x68] sm:$0xff]
    %v857 = vld [vmem:[%s842 + $0x70] sm:$0xff]
    %v858 = vld [vmem:[%s842 + $0x78] sm:$0xff]
    %859 = vmatprep.subr.mxu0 0.0
    %860 = vmatpush1.msra.mxu0 %v843
    %861 = vmatprep.subr.mxu0 0.0
    %862 = vmatpush1.msra.mxu0 %v844
    %863 = vmatprep.subr.mxu0 0.0
    %864 = vmatpush1.msra.mxu0 %v845
    %865 = vmatprep.subr.mxu0 0.0
    %866 = vmatpush1.msra.mxu0 %v846
    %867 = vmatprep.subr.mxu0 0.0
    %868 = vmatpush1.msra.mxu0 %v847
    %869 = vmatprep.subr.mxu0 0.0
    %870 = vmatpush1.msra.mxu0 %v848
    %871 = vmatprep.subr.mxu0 0.0
    %872 = vmatpush1.msra.mxu0 %v849
    %873 = vmatprep.subr.mxu0 0.0
    %874 = vmatpush1.msra.mxu0 %v850
    %875 = vmatprep.subr.mxu0 0.0
    %876 = vmatpush1.msra.mxu0 %v851
    %877 = vmatprep.subr.mxu0 0.0
    %878 = vmatpush1.msra.mxu0 %v852
    %879 = vmatprep.subr.mxu0 0.0
    %880 = vmatpush1.msra.mxu0 %v853
    %881 = vmatprep.subr.mxu0 0.0
    %882 = vmatpush1.msra.mxu0 %v854
    %883 = vmatprep.subr.mxu0 0.0
    %884 = vmatpush1.msra.mxu0 %v855
    %885 = vmatprep.subr.mxu0 0.0
    %886 = vmatpush1.msra.mxu0 %v856
    %887 = vmatprep.subr.mxu0 0.0
    %888 = vmatpush1.msra.mxu0 %v857
    %889 = vmatprep.subr.mxu0 0.0
    %890 = vmatpush1.msra.mxu0 %v858
    %891 = vmatprep.subr.mxu0 0.0
    %892 = vmatpush1.msra.mxu0 0.0
    %893 = vmatprep.subr.mxu0 0.0
    %894 = vmatpush1.msra.mxu0 0.0
    %895 = vmatprep.subr.mxu0 0.0
    %896 = vmatpush1.msra.mxu0 0.0
    %897 = vmatprep.subr.mxu0 0.0
    %898 = vmatpush1.msra.mxu0 0.0
    %899 = vmatprep.subr.mxu0 0.0
    %900 = vmatpush1.msra.mxu0 0.0
    %901 = vmatprep.subr.mxu0 0.0
    %902 = vmatpush1.msra.mxu0 0.0
    %903 = vmatprep.subr.mxu0 0.0
    %904 = vmatpush1.msra.mxu0 0.0
    %905 = vmatprep.subr.mxu0 0.0
    %906 = vmatpush1.msra.mxu0 0.0
    %907 = vmatprep.subr.mxu0 0.0
    %908 = vmatpush1.msra.mxu0 0.0
    %909 = vmatprep.subr.mxu0 0.0
    %910 = vmatpush1.msra.mxu0 0.0
    %911 = vmatprep.subr.mxu0 0.0
    %912 = vmatpush1.msra.mxu0 0.0
    %913 = vmatprep.subr.mxu0 0.0
    %914 = vmatpush1.msra.mxu0 0.0
    %915 = vmatprep.subr.mxu0 0.0
    %916 = vmatpush1.msra.mxu0 0.0
    %917 = vmatprep.subr.mxu0 0.0
    %918 = vmatpush1.msra.mxu0 0.0
    %919 = vmatprep.subr.mxu0 0.0
    %920 = vmatpush1.msra.mxu0 0.0
    %921 = vmatprep.subr.mxu0 0.0
    %922 = vmatpush1.msra.mxu0 0.0
    %923 = vmatprep.mubr.f32.mxu0 0.0
    %924 = vmatmul.mubr.f32.gmra.mrb[0].mxu0 %v841
    %v925 = vpop.f32.mrb[0].mxu0
    %v926 = vadd.f32 0.0, %v925
    %v927 = vpop.f32.mrb[0].mxu0
    %928 = vdwg.mxu0
    %v929 = vadd.f32 %v839, %v926
    %s930 = scalar_lea.vmem [#allocation2], 5
    %v931 = vld [vmem:[%s930] ss:$8 sm:$0x3]
    %s932 = scalar_lea.vmem %s4, 640
    %v933 = vld [vmem:[%s932] sm:$0xff]
    %v934 = vld [vmem:[%s932 + $0x8] sm:$0xff]
    %v935 = vld [vmem:[%s932 + $0x10] sm:$0xff]
    %v936 = vld [vmem:[%s932 + $0x18] sm:$0xff]
    %v937 = vld [vmem:[%s932 + $0x20] sm:$0xff]
    %v938 = vld [vmem:[%s932 + $0x28] sm:$0xff]
    %v939 = vld [vmem:[%s932 + $0x30] sm:$0xff]
    %v940 = vld [vmem:[%s932 + $0x38] sm:$0xff]
    %v941 = vld [vmem:[%s932 + $0x40] sm:$0xff]
    %v942 = vld [vmem:[%s932 + $0x48] sm:$0xff]
    %v943 = vld [vmem:[%s932 + $0x50] sm:$0xff]
    %v944 = vld [vmem:[%s932 + $0x58] sm:$0xff]
    %v945 = vld [vmem:[%s932 + $0x60] sm:$0xff]
    %v946 = vld [vmem:[%s932 + $0x68] sm:$0xff]
    %v947 = vld [vmem:[%s932 + $0x70] sm:$0xff]
    %v948 = vld [vmem:[%s932 + $0x78] sm:$0xff]
    %949 = vmatprep.subr.mxu0 0.0
    %950 = vmatpush1.msra.mxu0 %v933
    %951 = vmatprep.subr.mxu0 0.0
    %952 = vmatpush1.msra.mxu0 %v934
    %953 = vmatprep.subr.mxu0 0.0
    %954 = vmatpush1.msra.mxu0 %v935
    %955 = vmatprep.subr.mxu0 0.0
    %956 = vmatpush1.msra.mxu0 %v936
    %957 = vmatprep.subr.mxu0 0.0
    %958 = vmatpush1.msra.mxu0 %v937
    %959 = vmatprep.subr.mxu0 0.0
    %960 = vmatpush1.msra.mxu0 %v938
    %961 = vmatprep.subr.mxu0 0.0
    %962 = vmatpush1.msra.mxu0 %v939
    %963 = vmatprep.subr.mxu0 0.0
    %964 = vmatpush1.msra.mxu0 %v940
    %965 = vmatprep.subr.mxu0 0.0
    %966 = vmatpush1.msra.mxu0 %v941
    %967 = vmatprep.subr.mxu0 0.0
    %968 = vmatpush1.msra.mxu0 %v942
    %969 = vmatprep.subr.mxu0 0.0
    %970 = vmatpush1.msra.mxu0 %v943
    %971 = vmatprep.subr.mxu0 0.0
    %972 = vmatpush1.msra.mxu0 %v944
    %973 = vmatprep.subr.mxu0 0.0
    %974 = vmatpush1.msra.mxu0 %v945
    %975 = vmatprep.subr.mxu0 0.0
    %976 = vmatpush1.msra.mxu0 %v946
    %977 = vmatprep.subr.mxu0 0.0
    %978 = vmatpush1.msra.mxu0 %v947
    %979 = vmatprep.subr.mxu0 0.0
    %980 = vmatpush1.msra.mxu0 %v948
    %981 = vmatprep.subr.mxu0 0.0
    %982 = vmatpush1.msra.mxu0 0.0
    %983 = vmatprep.subr.mxu0 0.0
    %984 = vmatpush1.msra.mxu0 0.0
    %985 = vmatprep.subr.mxu0 0.0
    %986 = vmatpush1.msra.mxu0 0.0
    %987 = vmatprep.subr.mxu0 0.0
    %988 = vmatpush1.msra.mxu0 0.0
    %989 = vmatprep.subr.mxu0 0.0
    %990 = vmatpush1.msra.mxu0 0.0
    %991 = vmatprep.subr.mxu0 0.0
    %992 = vmatpush1.msra.mxu0 0.0
    %993 = vmatprep.subr.mxu0 0.0
    %994 = vmatpush1.msra.mxu0 0.0
    %995 = vmatprep.subr.mxu0 0.0
    %996 = vmatpush1.msra.mxu0 0.0
    %997 = vmatprep.subr.mxu0 0.0
    %998 = vmatpush1.msra.mxu0 0.0
    %999 = vmatprep.subr.mxu0 0.0
    %1000 = vmatpush1.msra.mxu0 0.0
    %1001 = vmatprep.subr.mxu0 0.0
    %1002 = vmatpush1.msra.mxu0 0.0
    %1003 = vmatprep.subr.mxu0 0.0
    %1004 = vmatpush1.msra.mxu0 0.0
    %1005 = vmatprep.subr.mxu0 0.0
    %1006 = vmatpush1.msra.mxu0 0.0
    %1007 = vmatprep.subr.mxu0 0.0
    %1008 = vmatpush1.msra.mxu0 0.0
    %1009 = vmatprep.subr.mxu0 0.0
    %1010 = vmatpush1.msra.mxu0 0.0
    %1011 = vmatprep.subr.mxu0 0.0
    %1012 = vmatpush1.msra.mxu0 0.0
    %1013 = vmatprep.mubr.f32.mxu0 0.0
    %1014 = vmatmul.mubr.f32.gmra.mrb[0].mxu0 %v931
    %v1015 = vpop.f32.mrb[0].mxu0
    %v1016 = vadd.f32 0.0, %v1015
    %v1017 = vpop.f32.mrb[0].mxu0
    %1018 = vdwg.mxu0
    %v1019 = vadd.f32 %v929, %v1016
    %s1020 = scalar_lea.vmem [#allocation2], 6
    %v1021 = vld [vmem:[%s1020] ss:$8 sm:$0x3]
    %s1022 = scalar_lea.vmem %s4, 768
    %v1023 = vld [vmem:[%s1022] sm:$0xff]
    %v1024 = vld [vmem:[%s1022 + $0x8] sm:$0xff]
    %v1025 = vld [vmem:[%s1022 + $0x10] sm:$0xff]
    %v1026 = vld [vmem:[%s1022 + $0x18] sm:$0xff]
    %v1027 = vld [vmem:[%s1022 + $0x20] sm:$0xff]
    %v1028 = vld [vmem:[%s1022 + $0x28] sm:$0xff]
    %v1029 = vld [vmem:[%s1022 + $0x30] sm:$0xff]
    %v1030 = vld [vmem:[%s1022 + $0x38] sm:$0xff]
    %v1031 = vld [vmem:[%s1022 + $0x40] sm:$0xff]
    %v1032 = vld [vmem:[%s1022 + $0x48] sm:$0xff]
    %v1033 = vld [vmem:[%s1022 + $0x50] sm:$0xff]
    %v1034 = vld [vmem:[%s1022 + $0x58] sm:$0xff]
    %v1035 = vld [vmem:[%s1022 + $0x60] sm:$0xff]
    %v1036 = vld [vmem:[%s1022 + $0x68] sm:$0xff]
    %v1037 = vld [vmem:[%s1022 + $0x70] sm:$0xff]
    %v1038 = vld [vmem:[%s1022 + $0x78] sm:$0xff]
    %1039 = vmatprep.subr.mxu0 0.0
    %1040 = vmatpush1.msra.mxu0 %v1023
    %1041 = vmatprep.subr.mxu0 0.0
    %1042 = vmatpush1.msra.mxu0 %v1024
    %1043 = vmatprep.subr.mxu0 0.0
    %1044 = vmatpush1.msra.mxu0 %v1025
    %1045 = vmatprep.subr.mxu0 0.0
    %1046 = vmatpush1.msra.mxu0 %v1026
    %1047 = vmatprep.subr.mxu0 0.0
    %1048 = vmatpush1.msra.mxu0 %v1027
    %1049 = vmatprep.subr.mxu0 0.0
    %1050 = vmatpush1.msra.mxu0 %v1028
    %1051 = vmatprep.subr.mxu0 0.0
    %1052 = vmatpush1.msra.mxu0 %v1029
    %1053 = vmatprep.subr.mxu0 0.0
    %1054 = vmatpush1.msra.mxu0 %v1030
    %1055 = vmatprep.subr.mxu0 0.0
    %1056 = vmatpush1.msra.mxu0 %v1031
    %1057 = vmatprep.subr.mxu0 0.0
    %1058 = vmatpush1.msra.mxu0 %v1032
    %1059 = vmatprep.subr.mxu0 0.0
    %1060 = vmatpush1.msra.mxu0 %v1033
    %1061 = vmatprep.subr.mxu0 0.0
    %1062 = vmatpush1.msra.mxu0 %v1034
    %1063 = vmatprep.subr.mxu0 0.0
    %1064 = vmatpush1.msra.mxu0 %v1035
    %1065 = vmatprep.subr.mxu0 0.0
    %1066 = vmatpush1.msra.mxu0 %v1036
    %1067 = vmatprep.subr.mxu0 0.0
    %1068 = vmatpush1.msra.mxu0 %v1037
    %1069 = vmatprep.subr.mxu0 0.0
    %1070 = vmatpush1.msra.mxu0 %v1038
    %1071 = vmatprep.subr.mxu0 0.0
    %1072 = vmatpush1.msra.mxu0 0.0
    %1073 = vmatprep.subr.mxu0 0.0
    %1074 = vmatpush1.msra.mxu0 0.0
    %1075 = vmatprep.subr.mxu0 0.0
    %1076 = vmatpush1.msra.mxu0 0.0
    %1077 = vmatprep.subr.mxu0 0.0
    %1078 = vmatpush1.msra.mxu0 0.0
    %1079 = vmatprep.subr.mxu0 0.0
    %1080 = vmatpush1.msra.mxu0 0.0
    %1081 = vmatprep.subr.mxu0 0.0
    %1082 = vmatpush1.msra.mxu0 0.0
    %1083 = vmatprep.subr.mxu0 0.0
    %1084 = vmatpush1.msra.mxu0 0.0
    %1085 = vmatprep.subr.mxu0 0.0
    %1086 = vmatpush1.msra.mxu0 0.0
    %1087 = vmatprep.subr.mxu0 0.0
    %1088 = vmatpush1.msra.mxu0 0.0
    %1089 = vmatprep.subr.mxu0 0.0
    %1090 = vmatpush1.msra.mxu0 0.0
    %1091 = vmatprep.subr.mxu0 0.0
    %1092 = vmatpush1.msra.mxu0 0.0
    %1093 = vmatprep.subr.mxu0 0.0
    %1094 = vmatpush1.msra.mxu0 0.0
    %1095 = vmatprep.subr.mxu0 0.0
    %1096 = vmatpush1.msra.mxu0 0.0
    %1097 = vmatprep.subr.mxu0 0.0
    %1098 = vmatpush1.msra.mxu0 0.0
    %1099 = vmatprep.subr.mxu0 0.0
    %1100 = vmatpush1.msra.mxu0 0.0
    %1101 = vmatprep.subr.mxu0 0.0
    %1102 = vmatpush1.msra.mxu0 0.0
    %1103 = vmatprep.mubr.f32.mxu0 0.0
    %1104 = vmatmul.mubr.f32.gmra.mrb[0].mxu0 %v1021
    %v1105 = vpop.f32.mrb[0].mxu0
    %v1106 = vadd.f32 0.0, %v1105
    %v1107 = vpop.f32.mrb[0].mxu0
    %1108 = vdwg.mxu0
    %v1109 = vadd.f32 %v1019, %v1106
    %s1110 = scalar_lea.vmem [#allocation2], 7
    %v1111 = vld [vmem:[%s1110] ss:$8 sm:$0x3]
    %s1112 = scalar_lea.vmem %s4, 896
    %v1113 = vld [vmem:[%s1112] sm:$0xff]
    %v1114 = vld [vmem:[%s1112 + $0x8] sm:$0xff]
    %v1115 = vld [vmem:[%s1112 + $0x10] sm:$0xff]
    %v1116 = vld [vmem:[%s1112 + $0x18] sm:$0xff]
    %v1117 = vld [vmem:[%s1112 + $0x20] sm:$0xff]
    %v1118 = vld [vmem:[%s1112 + $0x28] sm:$0xff]
    %v1119 = vld [vmem:[%s1112 + $0x30] sm:$0xff]
    %v1120 = vld [vmem:[%s1112 + $0x38] sm:$0xff]
    %v1121 = vld [vmem:[%s1112 + $0x40] sm:$0xff]
    %v1122 = vld [vmem:[%s1112 + $0x48] sm:$0xff]
    %v1123 = vld [vmem:[%s1112 + $0x50] sm:$0xff]
    %v1124 = vld [vmem:[%s1112 + $0x58] sm:$0xff]
    %v1125 = vld [vmem:[%s1112 + $0x60] sm:$0xff]
    %v1126 = vld [vmem:[%s1112 + $0x68] sm:$0xff]
    %v1127 = vld [vmem:[%s1112 + $0x70] sm:$0xff]
    %v1128 = vld [vmem:[%s1112 + $0x78] sm:$0xff]
    %1129 = vmatprep.subr.mxu0 0.0
    %1130 = vmatpush1.msra.mxu0 %v1113
    %1131 = vmatprep.subr.mxu0 0.0
    %1132 = vmatpush1.msra.mxu0 %v1114
    %1133 = vmatprep.subr.mxu0 0.0
    %1134 = vmatpush1.msra.mxu0 %v1115
    %1135 = vmatprep.subr.mxu0 0.0
    %1136 = vmatpush1.msra.mxu0 %v1116
    %1137 = vmatprep.subr.mxu0 0.0
    %1138 = vmatpush1.msra.mxu0 %v1117
    %1139 = vmatprep.subr.mxu0 0.0
    %1140 = vmatpush1.msra.mxu0 %v1118
    %1141 = vmatprep.subr.mxu0 0.0
    %1142 = vmatpush1.msra.mxu0 %v1119
    %1143 = vmatprep.subr.mxu0 0.0
    %1144 = vmatpush1.msra.mxu0 %v1120
    %1145 = vmatprep.subr.mxu0 0.0
    %1146 = vmatpush1.msra.mxu0 %v1121
    %1147 = vmatprep.subr.mxu0 0.0
    %1148 = vmatpush1.msra.mxu0 %v1122
    %1149 = vmatprep.subr.mxu0 0.0
    %1150 = vmatpush1.msra.mxu0 %v1123
    %1151 = vmatprep.subr.mxu0 0.0
    %1152 = vmatpush1.msra.mxu0 %v1124
    %1153 = vmatprep.subr.mxu0 0.0
    %1154 = vmatpush1.msra.mxu0 %v1125
    %1155 = vmatprep.subr.mxu0 0.0
    %1156 = vmatpush1.msra.mxu0 %v1126
    %1157 = vmatprep.subr.mxu0 0.0
    %1158 = vmatpush1.msra.mxu0 %v1127
    %1159 = vmatprep.subr.mxu0 0.0
    %1160 = vmatpush1.msra.mxu0 %v1128
    %1161 = vmatprep.subr.mxu0 0.0
    %1162 = vmatpush1.msra.mxu0 0.0
    %1163 = vmatprep.subr.mxu0 0.0
    %1164 = vmatpush1.msra.mxu0 0.0
    %1165 = vmatprep.subr.mxu0 0.0
    %1166 = vmatpush1.msra.mxu0 0.0
    %1167 = vmatprep.subr.mxu0 0.0
    %1168 = vmatpush1.msra.mxu0 0.0
    %1169 = vmatprep.subr.mxu0 0.0
    %1170 = vmatpush1.msra.mxu0 0.0
    %1171 = vmatprep.subr.mxu0 0.0
    %1172 = vmatpush1.msra.mxu0 0.0
    %1173 = vmatprep.subr.mxu0 0.0
    %1174 = vmatpush1.msra.mxu0 0.0
    %1175 = vmatprep.subr.mxu0 0.0
    %1176 = vmatpush1.msra.mxu0 0.0
    %1177 = vmatprep.subr.mxu0 0.0
    %1178 = vmatpush1.msra.mxu0 0.0
    %1179 = vmatprep.subr.mxu0 0.0
    %1180 = vmatpush1.msra.mxu0 0.0
    %1181 = vmatprep.subr.mxu0 0.0
    %1182 = vmatpush1.msra.mxu0 0.0
    %1183 = vmatprep.subr.mxu0 0.0
    %1184 = vmatpush1.msra.mxu0 0.0
    %1185 = vmatprep.subr.mxu0 0.0
    %1186 = vmatpush1.msra.mxu0 0.0
    %1187 = vmatprep.subr.mxu0 0.0
    %1188 = vmatpush1.msra.mxu0 0.0
    %1189 = vmatprep.subr.mxu0 0.0
    %1190 = vmatpush1.msra.mxu0 0.0
    %1191 = vmatprep.subr.mxu0 0.0
    %1192 = vmatpush1.msra.mxu0 0.0
    %1193 = vmatprep.mubr.f32.mxu0 0.0
    %1194 = vmatmul.mubr.f32.gmra.mrb[0].mxu0 %v1111
    %v1195 = vpop.f32.mrb[0].mxu0
    %v1196 = vadd.f32 0.0, %v1195
    %v1197 = vpop.f32.mrb[0].mxu0
    %1198 = vdwg.mxu0
    %v1199 = vadd.f32 %v1109, %v1196
    %v1200 = vld [vmem:[%s5] sm:$0x1]
    %v1202 = vlaneseq
    %v1203 = vshrl.u32 %v1202, 7
    %v1204 = vsub.s32 0, %v1203
    %v1205 = vrot.slane %v1200, %v1204
    %v1207 = vadd.f32 %v1199, %v1205
    %vm1208 = vcmask 254976
    %1209 = vst.msk [vmem:[#allocation3] sm:$0x3] %vm1208, %v1207
    // Predicated region
    $region26: #{_forward.1} parent=1 // pred_check
      _
    $region27: #{_forward.1} parent=1 // pred_check_branch
      %1211 = sbr.rel (0) target = $region29
    $region28: #{_forward.1} parent=1 // pred_region
      _
    $region29: #{_forward.1} parent=1 // pred_fallthru
      _
    // Predicated region
    $region30: #{_forward.1} parent=1 // pred_check
      _
    $region31: #{_forward.1} parent=1 // pred_check_branch
      %1213 = sbr.rel (0) target = $region33
    $region32: #{_forward.1} parent=1 // pred_region
      %s1215 = ssub.s32 32, 32
      %1216 = vsyncadd [#allocation4], %s1215
      %s1218 = sshll.u32 [#allocation3], 4
      %s1219 = int_to_ptr.vmem [resolvable:$true] %s1218
      %1221 = dma.vmem_to_hbm [thread:$0]  %s1219, 32, %s7, [#allocation4]
    $region33: #{_forward.1} parent=1 // pred_fallthru
      _
    // Predicated region
    $region34: #{_forward.1} parent=1 // pred_check
      _
    $region35: #{_forward.1} parent=1 // pred_check_branch
      %1223 = sbr.rel (0) target = $region37
    $region36: #{_forward.1} parent=1 // pred_region
      _
    $region37: #{_forward.1} parent=1 // pred_fallthru
      _
    // Predicated region
    $region38: #{_forward.1} parent=1 // pred_check
      _
    $region39: #{_forward.1} parent=1 // pred_check_branch
      %1225 = sbr.rel (0) target = $region41
    $region40: #{_forward.1} parent=1 // pred_region
      %1226 = dma.done [#allocation4], 32
    $region41: #{_forward.1} parent=1 // pred_fallthru
      _
    %1227 = vsyncpa [#allocation4], 1

</llo_original>
